<compile_context>
chip_gen: v7x
topology: tpu7x:2x2x1
jax: 0.10.0
libtpu: 0.0.40
codegen_flags: <defaults>
</compile_context>

<pallas_src>
import jax
import jax.numpy as jnp
from jax.scipy import linalg as jsl
from jax.experimental import pallas as pl
from jax.experimental.pallas import tpu as pltpu

# ----------------------------- configuration -------------------------------
INPUT_DIM = 16
NUM_VARS = 4
HIDDEN_DIM = 32
VAR_DIM = INPUT_DIM // NUM_VARS
NVH = NUM_VARS * HIDDEN_DIM          # 128: fused per-variable width (lane-dense)
LN_EPS = 1e-5

BATCH = 2
SEQ = 8
MAX_TM = 512                         # upper bound on rows per grid step

# Optional v6e/v7x tweak: run MXU matmuls with bf16 operands (f32 accumulation).
# Requires loosening the allclose tolerances in __main__ to ~1e-2; off by
# default to keep exact f32 forward semantics.
USE_BF16_MATMUL = False

# ---- packed-parameter slab layout (static row/col offsets) -----------------
# "mats" slab (MATS_ROWS, 256):
#   rows [0,128)   : W2GV   = [block-diag W2 | block-diag Wgate]       (128,256)
#   rows [128,256) : cols [0,128)   M128   group-mean, broadcast       (128,128)
#                    cols [128,256) OUTP   group-sum -> cols [0,32)    (128,128)
#   rows [256,272) : cols [0,128)   W1V    block-diag linear1          (16,128)
#                    cols [128,256) WSV    block-diag skip projection  (16,128)
#   rows [272,276) : cols [0,128)   EX     weights -> per-group bcast  (4,128)
#                    cols [128,256) WPLACE weights -> slab cols 32:36  (4,128)
R_W2GV = 0
R_LN = NVH                           # 128
R_W1 = 2 * NVH                       # 256
R_EXP = 2 * NVH + INPUT_DIM          # 272
MATS_ROWS = ((2 * NVH + INPUT_DIM + NUM_VARS + 7) // 8) * 8   # 280
MATS_COLS = 2 * NVH                  # 256

# "vecs" slab (VECS_ROWS, 256): weight-GRN matrices + every bias/gamma/beta.
V_W1W = 0                            # rows [0,16)   cols [0,32)
V_W2GW = INPUT_DIM                   # rows [16,48)  cols [0,8)   [W2 | Wgate]
V_WSW = INPUT_DIM + HIDDEN_DIM       # rows [48,64)  cols [0,4)
V_BIAS = 2 * INPUT_DIM + HIDDEN_DIM  # 64; then one row per vector:
#   +0 b1w(32) +1 b2gw(8) +2 bsw(4) +3 gamma_w(4) +4 beta_w(4)
#   +5 b1v(128) +6 bsv(128) +7 gamma_v(128) +8 beta_v(128) +9 b2gv(256)
VECS_ROWS = ((V_BIAS + 10 + 7) // 8) * 8                      # 80
VECS_COLS = 2 * NVH                  # 256


# ----------------------------- in-kernel math -------------------------------
def _dot(a, b):
    if USE_BF16_MATMUL:
        a = a.astype(jnp.bfloat16)
        b = b.astype(jnp.bfloat16)
    return jnp.dot(a, b, preferred_element_type=jnp.float32)


def _elu(x):
    # clamp the untaken branch so exp() never produces inf
    return jnp.where(x > 0, x, jnp.exp(jnp.minimum(x, 0.0)) - 1.0)


def vsn_kernel(x_ref, mats_ref, vecs_ref, out_ref):
    x = x_ref[...].astype(jnp.float32)                              # (TM, 16)

    # ---- static views into the packed parameter slabs ----------------------
    w2gv = mats_ref[R_W2GV:R_W2GV + NVH, :]                         # (128, 256)
    m128 = mats_ref[R_LN:R_LN + NVH, 0:NVH]                         # (128, 128)
    outp = mats_ref[R_LN:R_LN + NVH, NVH:2 * NVH]                   # (128, 128)
    w1v = mats_ref[R_W1:R_W1 + INPUT_DIM, 0:NVH]                    # (16, 128)
    wsv = mats_ref[R_W1:R_W1 + INPUT_DIM, NVH:2 * NVH]              # (16, 128)
    ex = mats_ref[R_EXP:R_EXP + NUM_VARS, 0:NVH]                    # (4, 128)
    wplace = mats_ref[R_EXP:R_EXP + NUM_VARS, NVH:2 * NVH]          # (4, 128)

    w1w = vecs_ref[V_W1W:V_W1W + INPUT_DIM, 0:HIDDEN_DIM]           # (16, 32)
    w2gw = vecs_ref[V_W2GW:V_W2GW + HIDDEN_DIM, 0:2 * NUM_VARS]     # (32, 8)
    wsw = vecs_ref[V_WSW:V_WSW + INPUT_DIM, 0:NUM_VARS]             # (16, 4)
    b1w = vecs_ref[V_BIAS + 0:V_BIAS + 1, 0:HIDDEN_DIM]             # (1, 32)
    b2gw = vecs_ref[V_BIAS + 1:V_BIAS + 2, 0:2 * NUM_VARS]          # (1, 8)
    bsw = vecs_ref[V_BIAS + 2:V_BIAS + 3, 0:NUM_VARS]               # (1, 4)
    gw = vecs_ref[V_BIAS + 3:V_BIAS + 4, 0:NUM_VARS]                # (1, 4)
    bw = vecs_ref[V_BIAS + 4:V_BIAS + 5, 0:NUM_VARS]                # (1, 4)
    b1v = vecs_ref[V_BIAS + 5:V_BIAS + 6, 0:NVH]                    # (1, 128)
    bsv = vecs_ref[V_BIAS + 6:V_BIAS + 7, 0:NVH]                    # (1, 128)
    gv = vecs_ref[V_BIAS + 7:V_BIAS + 8, 0:NVH]                     # (1, 128)
    bv = vecs_ref[V_BIAS + 8:V_BIAS + 9, 0:NVH]                     # (1, 128)
    b2gv = vecs_ref[V_BIAS + 9:V_BIAS + 10, :]                      # (1, 256)

    # ---- variable-selection weights: GRN(16 -> 32 -> 4) + softmax ----------
    h_w = _elu(_dot(x, w1w) + b1w)                                  # (TM, 32)
    og_w = _dot(h_w, w2gw) + b2gw                                   # (TM, 8) = [out|gate]
    y_w = og_w[:, 0:NUM_VARS] * jax.nn.sigmoid(og_w[:, NUM_VARS:2 * NUM_VARS])
    y_w = y_w + _dot(x, wsw) + bsw                                  # + skip projection
    mu_w = jnp.mean(y_w, axis=-1, keepdims=True)
    var_w = jnp.mean((y_w - mu_w) ** 2, axis=-1, keepdims=True)
    logits = (y_w - mu_w) * jax.lax.rsqrt(var_w + LN_EPS) * gw + bw
    mx = jnp.max(logits, axis=-1, keepdims=True)
    e = jnp.exp(logits - mx)
    weights = e * pl.reciprocal(jnp.sum(e, axis=-1, keepdims=True), approx=False)

    # ---- 4 per-variable GRNs fused into block-diag 128/256-lane matmuls ----
    h_v = _elu(_dot(x, w1v) + b1v)                                  # (TM, 128)
    og_v = _dot(h_v, w2gv) + b2gv                                   # (TM, 256) = [out|gate]
    y_v = og_v[:, 0:NVH] * jax.nn.sigmoid(og_v[:, NVH:2 * NVH])     # (TM, 128)
    y_v = y_v + _dot(x, wsv) + bsv                                  # + skip projection
    # grouped LayerNorm (per 32-wide variable block) via block-diag mean matmul
    mu_v = _dot(y_v, m128)                                          # group mean, bcast
    cen = y_v - mu_v
    var_v = _dot(cen * cen, m128)                                   # group var, bcast
    pv = cen * jax.lax.rsqrt(var_v + LN_EPS) * gv + bv              # (TM, 128)

    # ---- weighted sum over variables + lane-dense packed output ------------
    w_exp = _dot(weights, ex)                                       # (TM, 128)
    slab = _dot(pv * w_exp, outp) + _dot(weights, wplace)           # cols 0:32 = out,
    out_ref[...] = slab.astype(out_ref.dtype)                       # cols 32:36 = weights


# ----------------------------- wrapper --------------------------------------
def _round_up(v, m):
    return ((v + m - 1) // m) * m


def _choose_tm(m_rows):
    m8 = _round_up(max(m_rows, 1), 8)
    if m8 <= 8:
        return 8
    # Keep >= 2 grid steps (v7x megacore sharding), each up to MAX_TM rows.
    return min(MAX_TM, _round_up(pl.cdiv(m8, 2), 8))


def pack_params(p):
    """Repack natural (per-layer) parameters into the two pre-padded f32 slabs."""

    def bd(blocks):  # (num_vars, a, b) -> block-diagonal (num_vars*a, num_vars*b)
        return jsl.block_diag(*[blocks[i] for i in range(NUM_VARS)]).astype(jnp.float32)

    w1v_bd = bd(p["w1v"])                                            # (16, 128)
    wsv_bd = bd(p["wsv"])                                            # (16, 128)
    w2gv = jnp.concatenate([bd(p["w2v"]), bd(p["wgv"])], axis=1)     # (128, 256)

    eye_v = jnp.eye(NUM_VARS, dtype=jnp.float32)
    m128 = jnp.kron(eye_v, jnp.full((HIDDEN_DIM, HIDDEN_DIM), 1.0 / HIDDEN_DIM,
                                    jnp.float32))
    outp = jnp.concatenate(
        [jnp.tile(jnp.eye(HIDDEN_DIM, dtype=jnp.float32), (NUM_VARS, 1)),
         jnp.zeros((NVH, NVH - HIDDEN_DIM), jnp.float32)], axis=1)
    ex = jnp.kron(eye_v, jnp.ones((1, HIDDEN_DIM), jnp.float32))     # (4, 128)
    wplace = jnp.zeros((NUM_VARS, NVH), jnp.float32).at[
        jnp.arange(NUM_VARS), HIDDEN_DIM + jnp.arange(NUM_VARS)].set(1.0)

    mats = jnp.zeros((MATS_ROWS, MATS_COLS), jnp.float32)
    mats = mats.at[R_W2GV:R_W2GV + NVH, :].set(w2gv)
    mats = mats.at[R_LN:R_LN + NVH, 0:NVH].set(m128)
    mats = mats.at[R_LN:R_LN + NVH, NVH:2 * NVH].set(outp)
    mats = mats.at[R_W1:R_W1 + INPUT_DIM, 0:NVH].set(w1v_bd)
    mats = mats.at[R_W1:R_W1 + INPUT_DIM, NVH:2 * NVH].set(wsv_bd)
    mats = mats.at[R_EXP:R_EXP + NUM_VARS, 0:NVH].set(ex)
    mats = mats.at[R_EXP:R_EXP + NUM_VARS, NVH:2 * NVH].set(wplace)

    vecs = jnp.zeros((VECS_ROWS, VECS_COLS), jnp.float32)
    vecs = vecs.at[V_W1W:V_W1W + INPUT_DIM, 0:HIDDEN_DIM].set(p["w1w"])
    vecs = vecs.at[V_W2GW:V_W2GW + HIDDEN_DIM, 0:2 * NUM_VARS].set(
        jnp.concatenate([p["w2w"], p["wgw"]], axis=1))
    vecs = vecs.at[V_WSW:V_WSW + INPUT_DIM, 0:NUM_VARS].set(p["wsw"])
    vecs = vecs.at[V_BIAS + 0, 0:HIDDEN_DIM].set(p["b1w"][0])
    vecs = vecs.at[V_BIAS + 1, 0:2 * NUM_VARS].set(
        jnp.concatenate([p["b2w"][0], p["bgw"][0]]))
    vecs = vecs.at[V_BIAS + 2, 0:NUM_VARS].set(p["bsw"][0])
    vecs = vecs.at[V_BIAS + 3, 0:NUM_VARS].set(p["gw"][0])
    vecs = vecs.at[V_BIAS + 4, 0:NUM_VARS].set(p["bw"][0])
    vecs = vecs.at[V_BIAS + 5, 0:NVH].set(p["b1v"].reshape(-1))
    vecs = vecs.at[V_BIAS + 6, 0:NVH].set(p["bsv"].reshape(-1))
    vecs = vecs.at[V_BIAS + 7, 0:NVH].set(p["gv"].reshape(-1))
    vecs = vecs.at[V_BIAS + 8, 0:NVH].set(p["bv"].reshape(-1))
    vecs = vecs.at[V_BIAS + 9, :].set(
        jnp.concatenate([p["b2v"].reshape(-1), p["bgv"].reshape(-1)]))
    return mats, vecs


def variable_selection_network(x, params):
    """x: (batch, seq, input_dim) -> (output (B,S,hidden), weights (B,S,num_vars))."""
    b, s, d = x.shape
    assert d == INPUT_DIM
    m = b * s
    tm = _choose_tm(m)
    m_pad = _round_up(m, tm)
    x2 = x.reshape(m, d).astype(jnp.float32)
    if m_pad != m:
        x2 = jnp.pad(x2, ((0, m_pad - m), (0, 0)))

    mats, vecs = pack_params(params)

    slab = pl.pallas_call(
        vsn_kernel,
        out_shape=jax.ShapeDtypeStruct((m_pad, NVH), x.dtype),
        grid_spec=pltpu.PrefetchScalarGridSpec(
            num_scalar_prefetch=0,
            grid=(m_pad // tm,),
            in_specs=[
                pl.BlockSpec((tm, INPUT_DIM), lambda i: (i, 0)),
                # Parameter slabs: constant index_map -> fetched once, reused
                # for every grid step.
                pl.BlockSpec((MATS_ROWS, MATS_COLS), lambda i: (0, 0)),
                pl.BlockSpec((VECS_ROWS, VECS_COLS), lambda i: (0, 0)),
            ],
            out_specs=pl.BlockSpec((tm, NVH), lambda i: (i, 0)),
        ),
        compiler_params=pltpu.CompilerParams(
            dimension_semantics=("parallel",)),
    )(x2, mats, vecs)

    out = slab[:m, 0:HIDDEN_DIM].reshape(b, s, HIDDEN_DIM)
    wt = slab[:m, HIDDEN_DIM:HIDDEN_DIM + NUM_VARS].reshape(b, s, NUM_VARS)
    return out, wt


# ----------------------------- reference (plain JAX) ------------------------
def _grn_ref(x, w1, b1, w2, b2, wg, bg, ws, bs, gamma, beta, has_skip):
    h = jnp.where(x @ w1 + b1 > 0, x @ w1 + b1, jnp.exp(x @ w1 + b1) - 1.0)
    out = (h @ w2 + b2) * jax.nn.sigmoid(h @ wg + bg)
    skip = (x @ ws + bs) if has_skip else x
    y = out + skip
    mu = jnp.mean(y, -1, keepdims=True)
    var = jnp.mean((y - mu) ** 2, -1, keepdims=True)
    return (y - mu) / jnp.sqrt(var + LN_EPS) * gamma + beta


def vsn_reference(x, p):
    b, s, d = x.shape
    logits = _grn_ref(x, p["w1w"], p["b1w"], p["w2w"], p["b2w"], p["wgw"],
                      p["bgw"], p["wsw"], p["bsw"], p["gw"], p["bw"],
                      INPUT_DIM != NUM_VARS)
    weights = jax.nn.softmax(logits, axis=-1)
    xv = x.reshape(b, s, NUM_VARS, VAR_DIM)
    pvs = []
    for i in range(NUM_VARS):
        pv = _grn_ref(xv[:, :, i, :], p["w1v"][i], p["b1v"][i][0], p["w2v"][i],
                      p["b2v"][i][0], p["wgv"][i], p["bgv"][i][0], p["wsv"][i],
                      p["bsv"][i][0], p["gv"][i][0], p["bv"][i][0],
                      VAR_DIM != HIDDEN_DIM)
        pvs.append(pv)
    pvs = jnp.stack(pvs, axis=2)
    out = jnp.sum(pvs * weights[..., None], axis=2)
    return out, weights


# ----------------------------- parameter init -------------------------------
def init_params(key):
    ks = jax.random.split(key, 20)
    s = 0.1

    def w(k, shape):
        return jax.random.normal(k, shape, jnp.float32) * s

    params = {
        # variable_weights GRN: input_dim -> hidden -> num_vars
        "w1w": w(ks[0], (INPUT_DIM, HIDDEN_DIM)),
        "b1w": w(ks[1], (1, HIDDEN_DIM)),
        "w2w": w(ks[2], (HIDDEN_DIM, NUM_VARS)),
        "b2w": w(ks[3], (1, NUM_VARS)),
        "wgw": w(ks[4], (HIDDEN_DIM, NUM_VARS)),
        "bgw": w(ks[5], (1, NUM_VARS)),
        "wsw": w(ks[6], (INPUT_DIM, NUM_VARS)),
        "bsw": w(ks[7], (1, NUM_VARS)),
        "gw": jnp.ones((1, NUM_VARS), jnp.float32),
        "bw": jnp.zeros((1, NUM_VARS), jnp.float32),
        # stacked per-variable GRNs: var_dim -> hidden -> hidden
        "w1v": w(ks[8], (NUM_VARS, VAR_DIM, HIDDEN_DIM)),
        "b1v": w(ks[9], (NUM_VARS, 1, HIDDEN_DIM)),
        "w2v": w(ks[10], (NUM_VARS, HIDDEN_DIM, HIDDEN_DIM)),
        "b2v": w(ks[11], (NUM_VARS, 1, HIDDEN_DIM)),
        "wgv": w(ks[12], (NUM_VARS, HIDDEN_DIM, HIDDEN_DIM)),
        "bgv": w(ks[13], (NUM_VARS, 1, HIDDEN_DIM)),
        "wsv": w(ks[14], (NUM_VARS, VAR_DIM, HIDDEN_DIM)),
        "bsv": w(ks[15], (NUM_VARS, 1, HIDDEN_DIM)),
        "gv": jnp.ones((NUM_VARS, 1, HIDDEN_DIM), jnp.float32),
        "bv": jnp.zeros((NUM_VARS, 1, HIDDEN_DIM), jnp.float32),
    }
    return params


# ----------------------------- main ------------------------------------------
if __name__ == "__main__":
    key = jax.random.PRNGKey(0)
    k_x, k_p = jax.random.split(key)
    x = jax.random.normal(k_x, (BATCH, SEQ, INPUT_DIM), jnp.float32)
    params = init_params(k_p)

    out, weights = variable_selection_network(x, params)
    out, weights = jax.block_until_ready((out, weights))

    out_ref, w_ref = vsn_reference(x, params)
    assert out.shape == (BATCH, SEQ, HIDDEN_DIM)
    assert weights.shape == (BATCH, SEQ, NUM_VARS)
    assert jnp.allclose(out, out_ref, atol=1e-4, rtol=1e-4)
    assert jnp.allclose(weights, w_ref, atol=2e-5, rtol=1e-4)

    print("KERNEL_OK")
</pallas_src>

<mosaic_0001>
module attributes {stable_mosaic.version = 11 : i64} {
  func.func @vsn_kernel(%arg0: i32, %arg1: memref<8x16xf32, #tpu.memory_space<vmem>>, %arg2: memref<280x256xf32, #tpu.memory_space<vmem>>, %arg3: memref<80x256xf32, #tpu.memory_space<vmem>>, %arg4: memref<8x128xf32, #tpu.memory_space<vmem>>) attributes {dimension_semantics = [#tpu.dimension_semantics<parallel>], iteration_bounds = array<i64: 2>, scalar_prefetch = 0 : i64, scratch_operands = 0 : i64, tpu.core_type = #tpu.core_type<tc>, window_params = [{transform_indices = @transform_0, window_bounds = array<i64: 8, 16>}, {pipeline_mode = #tpu.pipeline_mode<synchronous>, transform_indices = @transform_1, window_bounds = array<i64: 280, 256>}, {pipeline_mode = #tpu.pipeline_mode<synchronous>, transform_indices = @transform_2, window_bounds = array<i64: 80, 256>}, {transform_indices = @transform_3, window_bounds = array<i64: 8, 128>}]} {
    %c0 = arith.constant 0 : index
    %c0_0 = arith.constant 0 : index
    %0 = vector.load %arg1[%c0, %c0_0] : memref<8x16xf32, #tpu.memory_space<vmem>>, vector<8x16xf32>
    %c0_1 = arith.constant 0 : index
    %c0_2 = arith.constant 0 : index
    %1 = vector.load %arg2[%c0_1, %c0_2] : memref<280x256xf32, #tpu.memory_space<vmem>>, vector<128x256xf32>
    %c128 = arith.constant 128 : index
    %c0_3 = arith.constant 0 : index
    %2 = vector.load %arg2[%c128, %c0_3] : memref<280x256xf32, #tpu.memory_space<vmem>>, vector<128x128xf32>
    %c128_4 = arith.constant 128 : index
    %c128_5 = arith.constant 128 : index
    %3 = vector.load %arg2[%c128_4, %c128_5] : memref<280x256xf32, #tpu.memory_space<vmem>>, vector<128x128xf32>
    %c256 = arith.constant 256 : index
    %c0_6 = arith.constant 0 : index
    %4 = vector.load %arg2[%c256, %c0_6] : memref<280x256xf32, #tpu.memory_space<vmem>>, vector<16x128xf32>
    %c256_7 = arith.constant 256 : index
    %c128_8 = arith.constant 128 : index
    %5 = vector.load %arg2[%c256_7, %c128_8] : memref<280x256xf32, #tpu.memory_space<vmem>>, vector<16x128xf32>
    %c272 = arith.constant 272 : index
    %c0_9 = arith.constant 0 : index
    %6 = vector.load %arg2[%c272, %c0_9] : memref<280x256xf32, #tpu.memory_space<vmem>>, vector<4x128xf32>
    %c272_10 = arith.constant 272 : index
    %c128_11 = arith.constant 128 : index
    %7 = vector.load %arg2[%c272_10, %c128_11] : memref<280x256xf32, #tpu.memory_space<vmem>>, vector<4x128xf32>
    %c0_12 = arith.constant 0 : index
    %c0_13 = arith.constant 0 : index
    %8 = vector.load %arg3[%c0_12, %c0_13] : memref<80x256xf32, #tpu.memory_space<vmem>>, vector<16x32xf32>
    %c16 = arith.constant 16 : index
    %c0_14 = arith.constant 0 : index
    %9 = vector.load %arg3[%c16, %c0_14] : memref<80x256xf32, #tpu.memory_space<vmem>>, vector<32x8xf32>
    %c48 = arith.constant 48 : index
    %c0_15 = arith.constant 0 : index
    %10 = vector.load %arg3[%c48, %c0_15] : memref<80x256xf32, #tpu.memory_space<vmem>>, vector<16x4xf32>
    %c64 = arith.constant 64 : index
    %c0_16 = arith.constant 0 : index
    %11 = vector.load %arg3[%c64, %c0_16] : memref<80x256xf32, #tpu.memory_space<vmem>>, vector<1x32xf32>
    %c65 = arith.constant 65 : index
    %c0_17 = arith.constant 0 : index
    %12 = vector.load %arg3[%c65, %c0_17] : memref<80x256xf32, #tpu.memory_space<vmem>>, vector<1x8xf32>
    %c66 = arith.constant 66 : index
    %c0_18 = arith.constant 0 : index
    %13 = vector.load %arg3[%c66, %c0_18] : memref<80x256xf32, #tpu.memory_space<vmem>>, vector<1x4xf32>
    %c67 = arith.constant 67 : index
    %c0_19 = arith.constant 0 : index
    %14 = vector.load %arg3[%c67, %c0_19] : memref<80x256xf32, #tpu.memory_space<vmem>>, vector<1x4xf32>
    %c68 = arith.constant 68 : index
    %c0_20 = arith.constant 0 : index
    %15 = vector.load %arg3[%c68, %c0_20] : memref<80x256xf32, #tpu.memory_space<vmem>>, vector<1x4xf32>
    %c69 = arith.constant 69 : index
    %c0_21 = arith.constant 0 : index
    %16 = vector.load %arg3[%c69, %c0_21] : memref<80x256xf32, #tpu.memory_space<vmem>>, vector<1x128xf32>
    %c70 = arith.constant 70 : index
    %c0_22 = arith.constant 0 : index
    %17 = vector.load %arg3[%c70, %c0_22] : memref<80x256xf32, #tpu.memory_space<vmem>>, vector<1x128xf32>
    %c71 = arith.constant 71 : index
    %c0_23 = arith.constant 0 : index
    %18 = vector.load %arg3[%c71, %c0_23] : memref<80x256xf32, #tpu.memory_space<vmem>>, vector<1x128xf32>
    %c72 = arith.constant 72 : index
    %c0_24 = arith.constant 0 : index
    %19 = vector.load %arg3[%c72, %c0_24] : memref<80x256xf32, #tpu.memory_space<vmem>>, vector<1x128xf32>
    %c73 = arith.constant 73 : index
    %c0_25 = arith.constant 0 : index
    %20 = vector.load %arg3[%c73, %c0_25] : memref<80x256xf32, #tpu.memory_space<vmem>>, vector<1x256xf32>
    %cst = arith.constant dense<0.000000e+00> : vector<8x32xf32>
    %21 = tpu.matmul %0, %8, %cst {dimension_numbers = #tpu.dot_dimension_numbers<[1], [0], [0], [1], [0, 0, 1, 1], [], []>} : vector<8x16xf32>, vector<16x32xf32>, vector<8x32xf32> -> vector<8x32xf32>
    %22 = vector.broadcast %11 : vector<1x32xf32> to vector<8x32xf32>
    %23 = arith.addf %21, %22 : vector<8x32xf32>
    %cst_26 = arith.constant 0.000000e+00 : f32
    %24 = vector.broadcast %cst_26 : f32 to vector<8x32xf32>
    %25 = arith.cmpf ogt, %23, %24 : vector<8x32xf32>
    %cst_27 = arith.constant 0.000000e+00 : f32
    %26 = vector.broadcast %cst_27 : f32 to vector<8x32xf32>
    %27 = arith.minimumf %23, %26 : vector<8x32xf32>
    %28 = math.exp %27 : vector<8x32xf32>
    %cst_28 = arith.constant 1.000000e+00 : f32
    %29 = vector.broadcast %cst_28 : f32 to vector<8x32xf32>
    %30 = arith.subf %28, %29 : vector<8x32xf32>
    %31 = arith.select %25, %23, %30 : vector<8x32xi1>, vector<8x32xf32>
    %cst_29 = arith.constant dense<0.000000e+00> : vector<8x8xf32>
    %32 = tpu.matmul %31, %9, %cst_29 {dimension_numbers = #tpu.dot_dimension_numbers<[1], [0], [0], [1], [0, 0, 1, 1], [], []>} : vector<8x32xf32>, vector<32x8xf32>, vector<8x8xf32> -> vector<8x8xf32>
    %33 = vector.broadcast %12 : vector<1x8xf32> to vector<8x8xf32>
    %34 = arith.addf %32, %33 : vector<8x8xf32>
    %35 = vector.extract_strided_slice %34 {offsets = [0, 0], sizes = [8, 4], strides = [1, 1]} : vector<8x8xf32> to vector<8x4xf32>
    %36 = vector.extract_strided_slice %34 {offsets = [0, 4], sizes = [8, 4], strides = [1, 1]} : vector<8x8xf32> to vector<8x4xf32>
    %37 = arith.negf %36 : vector<8x4xf32>
    %38 = math.exp %37 : vector<8x4xf32>
    %cst_30 = arith.constant 1.000000e+00 : f32
    %39 = vector.broadcast %cst_30 : f32 to vector<8x4xf32>
    %40 = arith.addf %39, %38 : vector<8x4xf32>
    %41 = arith.divf %39, %40 : vector<8x4xf32>
    %42 = arith.mulf %35, %41 : vector<8x4xf32>
    %cst_31 = arith.constant dense<0.000000e+00> : vector<8x4xf32>
    %43 = tpu.matmul %0, %10, %cst_31 {dimension_numbers = #tpu.dot_dimension_numbers<[1], [0], [0], [1], [0, 0, 1, 1], [], []>} : vector<8x16xf32>, vector<16x4xf32>, vector<8x4xf32> -> vector<8x4xf32>
    %44 = arith.addf %42, %43 : vector<8x4xf32>
    %45 = vector.broadcast %13 : vector<1x4xf32> to vector<8x4xf32>
    %46 = arith.addf %44, %45 : vector<8x4xf32>
    %cst_32 = arith.constant dense<0.000000e+00> : vector<8xf32>
    %47 = vector.multi_reduction <add>, %46, %cst_32 [1] : vector<8x4xf32> to vector<8xf32>
    %48 = vector.shape_cast %47 : vector<8xf32> to vector<8x1xf32>
    %cst_33 = arith.constant 4.000000e+00 : f32
    %49 = vector.broadcast %cst_33 : f32 to vector<8x1xf32>
    %50 = arith.divf %48, %49 : vector<8x1xf32>
    %51 = vector.broadcast %50 : vector<8x1xf32> to vector<8x4xf32>
    %52 = arith.subf %46, %51 : vector<8x4xf32>
    %53 = arith.mulf %52, %52 : vector<8x4xf32>
    %cst_34 = arith.constant dense<0.000000e+00> : vector<8xf32>
    %54 = vector.multi_reduction <add>, %53, %cst_34 [1] : vector<8x4xf32> to vector<8xf32>
    %55 = vector.shape_cast %54 : vector<8xf32> to vector<8x1xf32>
    %cst_35 = arith.constant 4.000000e+00 : f32
    %56 = vector.broadcast %cst_35 : f32 to vector<8x1xf32>
    %57 = arith.divf %55, %56 : vector<8x1xf32>
    %58 = vector.broadcast %50 : vector<8x1xf32> to vector<8x4xf32>
    %59 = arith.subf %46, %58 : vector<8x4xf32>
    %cst_36 = arith.constant 9.99999974E-6 : f32
    %60 = vector.broadcast %cst_36 : f32 to vector<8x1xf32>
    %61 = arith.addf %57, %60 : vector<8x1xf32>
    %62 = math.rsqrt %61 : vector<8x1xf32>
    %63 = vector.broadcast %62 : vector<8x1xf32> to vector<8x4xf32>
    %64 = arith.mulf %59, %63 : vector<8x4xf32>
    %65 = vector.broadcast %14 : vector<1x4xf32> to vector<8x4xf32>
    %66 = arith.mulf %64, %65 : vector<8x4xf32>
    %67 = vector.broadcast %15 : vector<1x4xf32> to vector<8x4xf32>
    %68 = arith.addf %66, %67 : vector<8x4xf32>
    %cst_37 = arith.constant dense<0xFF800000> : vector<8xf32>
    %69 = vector.multi_reduction <maximumf>, %68, %cst_37 [1] : vector<8x4xf32> to vector<8xf32>
    %70 = vector.shape_cast %69 : vector<8xf32> to vector<8x1xf32>
    %71 = vector.broadcast %70 : vector<8x1xf32> to vector<8x4xf32>
    %72 = arith.subf %68, %71 : vector<8x4xf32>
    %73 = math.exp %72 : vector<8x4xf32>
    %cst_38 = arith.constant dense<0.000000e+00> : vector<8xf32>
    %74 = vector.multi_reduction <add>, %73, %cst_38 [1] : vector<8x4xf32> to vector<8xf32>
    %75 = vector.shape_cast %74 : vector<8xf32> to vector<8x1xf32>
    %76 = tpu.reciprocal %75 : vector<8x1xf32> -> vector<8x1xf32>
    %77 = vector.broadcast %76 : vector<8x1xf32> to vector<8x4xf32>
    %78 = arith.mulf %73, %77 : vector<8x4xf32>
    %cst_39 = arith.constant dense<0.000000e+00> : vector<8x128xf32>
    %79 = tpu.matmul %0, %4, %cst_39 {dimension_numbers = #tpu.dot_dimension_numbers<[1], [0], [0], [1], [0, 0, 1, 1], [], []>} : vector<8x16xf32>, vector<16x128xf32>, vector<8x128xf32> -> vector<8x128xf32>
    %80 = vector.broadcast %16 : vector<1x128xf32> to vector<8x128xf32>
    %81 = arith.addf %79, %80 : vector<8x128xf32>
    %cst_40 = arith.constant 0.000000e+00 : f32
    %82 = vector.broadcast %cst_40 : f32 to vector<8x128xf32>
    %83 = arith.cmpf ogt, %81, %82 : vector<8x128xf32>
    %cst_41 = arith.constant 0.000000e+00 : f32
    %84 = vector.broadcast %cst_41 : f32 to vector<8x128xf32>
    %85 = arith.minimumf %81, %84 : vector<8x128xf32>
    %86 = math.exp %85 : vector<8x128xf32>
    %cst_42 = arith.constant 1.000000e+00 : f32
    %87 = vector.broadcast %cst_42 : f32 to vector<8x128xf32>
    %88 = arith.subf %86, %87 : vector<8x128xf32>
    %89 = arith.select %83, %81, %88 : vector<8x128xi1>, vector<8x128xf32>
    %cst_43 = arith.constant dense<0.000000e+00> : vector<8x256xf32>
    %90 = tpu.matmul %89, %1, %cst_43 {dimension_numbers = #tpu.dot_dimension_numbers<[1], [0], [0], [1], [0, 0, 1, 1], [], []>} : vector<8x128xf32>, vector<128x256xf32>, vector<8x256xf32> -> vector<8x256xf32>
    %91 = vector.broadcast %20 : vector<1x256xf32> to vector<8x256xf32>
    %92 = arith.addf %90, %91 : vector<8x256xf32>
    %93 = vector.extract_strided_slice %92 {offsets = [0, 0], sizes = [8, 128], strides = [1, 1]} : vector<8x256xf32> to vector<8x128xf32>
    %94 = vector.extract_strided_slice %92 {offsets = [0, 128], sizes = [8, 128], strides = [1, 1]} : vector<8x256xf32> to vector<8x128xf32>
    %95 = arith.negf %94 : vector<8x128xf32>
    %96 = math.exp %95 : vector<8x128xf32>
    %cst_44 = arith.constant 1.000000e+00 : f32
    %97 = vector.broadcast %cst_44 : f32 to vector<8x128xf32>
    %98 = arith.addf %97, %96 : vector<8x128xf32>
    %99 = arith.divf %97, %98 : vector<8x128xf32>
    %100 = arith.mulf %93, %99 : vector<8x128xf32>
    %cst_45 = arith.constant dense<0.000000e+00> : vector<8x128xf32>
    %101 = tpu.matmul %0, %5, %cst_45 {dimension_numbers = #tpu.dot_dimension_numbers<[1], [0], [0], [1], [0, 0, 1, 1], [], []>} : vector<8x16xf32>, vector<16x128xf32>, vector<8x128xf32> -> vector<8x128xf32>
    %102 = arith.addf %100, %101 : vector<8x128xf32>
    %103 = vector.broadcast %17 : vector<1x128xf32> to vector<8x128xf32>
    %104 = arith.addf %102, %103 : vector<8x128xf32>
    %cst_46 = arith.constant dense<0.000000e+00> : vector<8x128xf32>
    %105 = tpu.matmul %104, %2, %cst_46 {dimension_numbers = #tpu.dot_dimension_numbers<[1], [0], [0], [1], [0, 0, 1, 1], [], []>} : vector<8x128xf32>, vector<128x128xf32>, vector<8x128xf32> -> vector<8x128xf32>
    %106 = arith.subf %104, %105 : vector<8x128xf32>
    %107 = arith.mulf %106, %106 : vector<8x128xf32>
    %cst_47 = arith.constant dense<0.000000e+00> : vector<8x128xf32>
    %108 = tpu.matmul %107, %2, %cst_47 {dimension_numbers = #tpu.dot_dimension_numbers<[1], [0], [0], [1], [0, 0, 1, 1], [], []>} : vector<8x128xf32>, vector<128x128xf32>, vector<8x128xf32> -> vector<8x128xf32>
    %cst_48 = arith.constant 9.99999974E-6 : f32
    %109 = vector.broadcast %cst_48 : f32 to vector<8x128xf32>
    %110 = arith.addf %108, %109 : vector<8x128xf32>
    %111 = math.rsqrt %110 : vector<8x128xf32>
    %112 = arith.mulf %106, %111 : vector<8x128xf32>
    %113 = vector.broadcast %18 : vector<1x128xf32> to vector<8x128xf32>
    %114 = arith.mulf %112, %113 : vector<8x128xf32>
    %115 = vector.broadcast %19 : vector<1x128xf32> to vector<8x128xf32>
    %116 = arith.addf %114, %115 : vector<8x128xf32>
    %cst_49 = arith.constant dense<0.000000e+00> : vector<8x128xf32>
    %117 = tpu.matmul %78, %6, %cst_49 {dimension_numbers = #tpu.dot_dimension_numbers<[1], [0], [0], [1], [0, 0, 1, 1], [], []>} : vector<8x4xf32>, vector<4x128xf32>, vector<8x128xf32> -> vector<8x128xf32>
    %118 = arith.mulf %116, %117 : vector<8x128xf32>
    %cst_50 = arith.constant dense<0.000000e+00> : vector<8x128xf32>
    %119 = tpu.matmul %118, %3, %cst_50 {dimension_numbers = #tpu.dot_dimension_numbers<[1], [0], [0], [1], [0, 0, 1, 1], [], []>} : vector<8x128xf32>, vector<128x128xf32>, vector<8x128xf32> -> vector<8x128xf32>
    %cst_51 = arith.constant dense<0.000000e+00> : vector<8x128xf32>
    %120 = tpu.matmul %78, %7, %cst_51 {dimension_numbers = #tpu.dot_dimension_numbers<[1], [0], [0], [1], [0, 0, 1, 1], [], []>} : vector<8x4xf32>, vector<4x128xf32>, vector<8x128xf32> -> vector<8x128xf32>
    %121 = arith.addf %119, %120 : vector<8x128xf32>
    %c0_52 = arith.constant 0 : index
    %c0_53 = arith.constant 0 : index
    %122 = vector.load %arg4[%c0_52, %c0_53] : memref<8x128xf32, #tpu.memory_space<vmem>>, vector<8x128xf32>
    tpu.vector_store %arg4[%c0_52, %c0_53], %121 {strides = array<i32>} : memref<8x128xf32, #tpu.memory_space<vmem>>, vector<8x128xf32>,
    return
  }
  func.func @transform_0(%arg0: i32) -> (i32, i32) {
    %c0_i32 = arith.constant 0 : i32
    %c0_i32_0 = arith.constant 0 : i32
    return %arg0, %c0_i32 : i32, i32
  }
  func.func @transform_1(%arg0: i32) -> (i32, i32) {
    %c0_i32 = arith.constant 0 : i32
    %c0_i32_0 = arith.constant 0 : i32
    %c0_i32_1 = arith.constant 0 : i32
    return %c0_i32, %c0_i32_0 : i32, i32
  }
  func.func @transform_2(%arg0: i32) -> (i32, i32) {
    %c0_i32 = arith.constant 0 : i32
    %c0_i32_0 = arith.constant 0 : i32
    %c0_i32_1 = arith.constant 0 : i32
    return %c0_i32, %c0_i32_0 : i32, i32
  }
  func.func @transform_3(%arg0: i32) -> (i32, i32) {
    %c0_i32 = arith.constant 0 : i32
    %c0_i32_0 = arith.constant 0 : i32
    return %arg0, %c0_i32 : i32, i32
  }
}

</mosaic_0001>

<llo_original>
// kernel: tpu_custom_call.1
$region0: #{tpu_custom_call.1}
  #allocation0 [shape = 'u32[]', space=smem, size = 0x4, offset = 0x4, fixed_abs, tag = 'smem constant byte address 0x4 - core index']
  #allocation1 [shape = 'u32[144,128]{1,0:T(1,128)}', space=vmem, size = 0x12000, scoped, tag = 'internal scratch']
  %s0 = inlined_call_operand.hbm [shape: f32[16,16], index: 0, kind: input, shape index: {}]
  %s1 = inlined_call_operand.hbm [shape: f32[280,256], index: 1, kind: input, shape index: {}]
  %s2 = inlined_call_operand.hbm [shape: f32[80,256], index: 2, kind: input, shape index: {}]
  %s3 = inlined_call_operand.hbm [shape: f32[16,128], index: 3, kind: output, shape index: {}]
  %s4 = sld [smem:[#allocation0]]
  $region57: #{tpu_custom_call.1} parent=0
    _
  %s6 = ssub.s32 1, %s4
  %s7 = scalar_select 0, %s6, %s4
  $region1: #{tpu_custom_call.1} parent=0
    #allocation2 [shape = 'u8[8192]{0}', space=vmem, size = 0x2000, scoped, tag = 'input window, operand 0']
    #allocation3 [shape = 's32[2]{0}', space=sflag, size = 0x8, scoped, tag = 'scoped memory for tpu_custom_call.1']
    #allocation4 [shape = 's32[2]{0}', space=sflag, size = 0x8, scoped, tag = 'scoped memory for tpu_custom_call.1']
    #allocation5 [shape = 'u8[286720]{0}', space=vmem, size = 0x46000, scoped, tag = 'input window, operand 1, single buffered']
    #allocation6 [shape = 's32[1]{0}', space=sflag, size = 0x4, scoped, tag = 'scoped memory for tpu_custom_call.1']
    #allocation7 [shape = 'u8[81920]{0}', space=vmem, size = 0x14000, scoped, tag = 'input window, operand 2, single buffered']
    #allocation8 [shape = 'u8[8192]{0}', space=vmem, size = 0x2000, scoped, tag = 'output window, operand 0']
    %8 = vsyncpa [#allocation3], 0
    %s9 = scalar_lea.sflag [#allocation3], 1
    %10 = vsyncpa %s9, 0
    %11 = vsyncpa [#allocation6], 0
    %12 = vsyncpa [#allocation4], 0
    %s13 = scalar_lea.sflag [#allocation4], 1
    %14 = vsyncpa %s13, 0
    loop: start=0, step=1, limit=4
    $region2: #{tpu_custom_call.1} parent=1 // loop_pre_header
      _
    $region3: #{tpu_custom_call.1} parent=1 // loop_header
      %s16 = sphi 0, %s20
      %p17 = scmp.ge.s32.totalorder %s16, 4
      %s26 = sphi 0, %s28
      %s29 = sphi 0, %s26
      %s30 = sphi 0, %s29
      %s46 = sphi 0, %s30
      %s50 = sphi 0, %s50
      %s52 = sphi 0, %s50
      %s53 = sphi 0, %s52
      %s67 = sphi 0, %s53
      %s71 = sphi 0, %s71
      %s73 = sphi 0, %s71
      %s74 = sphi 0, %s73
      %s88 = sphi 0, %s74
      %s94 = sphi 0, %s96
      %s97 = sphi 0, %s94
      %s98 = sphi 0, %s97
      %s114 = sphi 0, %s98
    $region4: #{tpu_custom_call.1} parent=1 // loop_header_branch
      %19 = sbr.rel (%p17) target = $region8
    $region5: #{tpu_custom_call.1} parent=1 // loop_body
      %s21 = ssub.s32 %s16, 1
      %s22 = ssub.s32 %s16, 2
      %s23 = sadd.s32 %s16, 1
      %s24 = ssub.s32 %s16, %s23
      %p25 = scmp.eq.s32.totalorder %s24, 0
      %s27 = sadd.s32 %s26, 1
      %s28 = scalar_select %p25, %s26, %s27
      %p31 = pneg %p25
      %p32 = scmp.eq.s32.totalorder %s16, 1
      %p33 = por %p31, %p32
      %p34 = scmp.ne.s32.totalorder %s26, %s29
      %p35 = scmp.eq.s32.totalorder %s16, 0
      %p36 = por %p34, %p35
      %p37 = scmp.ne.s32.totalorder %s26, %s29
      %p38 = scmp.eq.s32.totalorder %s21, 1
      %p39 = por %p37, %p38
      %p40 = scmp.ne.s32.totalorder %s29, %s30
      %p41 = scmp.eq.s32.totalorder %s21, 0
      %p42 = por %p40, %p41
      %p43 = scmp.ne.s32.totalorder %s29, %s30
      %p44 = scmp.eq.s32.totalorder %s22, 1
      %p45 = por %p43, %p44
      %p47 = scmp.ne.s32.totalorder %s30, %s46
      %p48 = scmp.eq.s32.totalorder %s22, 0
      %p49 = por %p47, %p48
      %s51 = sadd.s32 %s50, 1
      %p54 = scmp.eq.s32.totalorder %s16, 1
      %p55 = scmp.ne.s32.totalorder %s50, %s52
      %p56 = scmp.eq.s32.totalorder %s16, 0
      %p57 = por %p55, %p56
      %p58 = scmp.ne.s32.totalorder %s50, %s52
      %p59 = scmp.eq.s32.totalorder %s21, 1
      %p60 = por %p58, %p59
      %p61 = scmp.ne.s32.totalorder %s52, %s53
      %p62 = scmp.eq.s32.totalorder %s21, 0
      %p63 = por %p61, %p62
      %p64 = scmp.ne.s32.totalorder %s52, %s53
      %p65 = scmp.eq.s32.totalorder %s22, 1
      %p66 = por %p64, %p65
      %p68 = scmp.ne.s32.totalorder %s53, %s67
      %p69 = scmp.eq.s32.totalorder %s22, 0
      %p70 = por %p68, %p69
      %s72 = sadd.s32 %s71, 1
      %p75 = scmp.eq.s32.totalorder %s16, 1
      %p76 = scmp.ne.s32.totalorder %s71, %s73
      %p77 = scmp.eq.s32.totalorder %s16, 0
      %p78 = por %p76, %p77
      %p79 = scmp.ne.s32.totalorder %s71, %s73
      %p80 = scmp.eq.s32.totalorder %s21, 1
      %p81 = por %p79, %p80
      %p82 = scmp.ne.s32.totalorder %s73, %s74
      %p83 = scmp.eq.s32.totalorder %s21, 0
      %p84 = por %p82, %p83
      %p85 = scmp.ne.s32.totalorder %s73, %s74
      %p86 = scmp.eq.s32.totalorder %s22, 1
      %p87 = por %p85, %p86
      %p89 = scmp.ne.s32.totalorder %s74, %s88
      %p90 = scmp.eq.s32.totalorder %s22, 0
      %p91 = por %p89, %p90
      %s92 = ssub.s32 %s16, %s23
      %p93 = scmp.eq.s32.totalorder %s92, 0
      %s95 = sadd.s32 %s94, 1
      %s96 = scalar_select %p93, %s94, %s95
      %p99 = pneg %p93
      %p100 = scmp.eq.s32.totalorder %s16, 1
      %p101 = por %p99, %p100
      %p102 = scmp.ne.s32.totalorder %s94, %s97
      %p103 = scmp.eq.s32.totalorder %s16, 0
      %p104 = por %p102, %p103
      %p105 = scmp.ne.s32.totalorder %s94, %s97
      %p106 = scmp.eq.s32.totalorder %s21, 1
      %p107 = por %p105, %p106
      %p108 = scmp.ne.s32.totalorder %s97, %s98
      %p109 = scmp.eq.s32.totalorder %s21, 0
      %p110 = por %p108, %p109
      %p111 = scmp.ne.s32.totalorder %s97, %s98
      %p112 = scmp.eq.s32.totalorder %s22, 1
      %p113 = por %p111, %p112
      %p115 = scmp.ne.s32.totalorder %s98, %s114
      %p116 = scmp.eq.s32.totalorder %s22, 0
      %p117 = por %p115, %p116
      %p118 = scmp.le.s32.totalorder 1, %s16
      %p119 = scmp.lt.s32.totalorder %s16, 3
      %p120 = pnand %p118, %p119
      %p121 = pneg %p120
      // Predicated region
      $region9: #{tpu_custom_call.1} parent=5 // pred_check
        _
      $region10: #{tpu_custom_call.1} parent=5 // pred_check_branch
        %123 = sbr.rel (%p120) target = $region12
      $region11: #{tpu_custom_call.1} parent=5 // pred_region
        %s124 = ssub.s32 %s16, 1
        // Predicated region
        $region13: #{tpu_custom_call.1} parent=11 // pred_check
          %p125 = pneg %p63
        $region14: #{tpu_custom_call.1} parent=11 // pred_check_branch
          %127 = sbr.rel (%p125) target = $region16
        $region15: #{tpu_custom_call.1} parent=11 // pred_region
          %s129 = ssub.s32 8960, 8960
          %130 = vsyncadd [#allocation6], %s129
          %s131 = sshll.u32 [#allocation5], 4
          %s132 = int_to_ptr.vmem [resolvable:$true] %s131
          %137 = dma.hbm_to_vmem [thread:$0]  %s1, 8960, %s132, [#allocation6], 256, 256, 16
        $region16: #{tpu_custom_call.1} parent=11 // pred_fallthru
          _
        // Predicated region
        $region17: #{tpu_custom_call.1} parent=11 // pred_check
          %p138 = pneg %p84
        $region18: #{tpu_custom_call.1} parent=11 // pred_check_branch
          %140 = sbr.rel (%p138) target = $region20
        $region19: #{tpu_custom_call.1} parent=11 // pred_region
          %s142 = ssub.s32 2560, 2560
          %143 = vsyncadd [#allocation6], %s142
          %s144 = sshll.u32 [#allocation7], 4
          %s145 = int_to_ptr.vmem [resolvable:$true] %s144
          %150 = dma.hbm_to_vmem [thread:$0]  %s2, 2560, %s145, [#allocation6], 256, 256, 16
        $region20: #{tpu_custom_call.1} parent=11 // pred_fallthru
          _
      $region12: #{tpu_custom_call.1} parent=5 // pred_fallthru
        _
      %p151 = scmp.lt.s32.totalorder %s16, 2
      // Predicated region
      $region21: #{tpu_custom_call.1} parent=5 // pred_check
        %p152 = pneg %p151
      $region22: #{tpu_custom_call.1} parent=5 // pred_check_branch
        %154 = sbr.rel (%p152) target = $region24
      $region23: #{tpu_custom_call.1} parent=5 // pred_region
        // Predicated region
        $region25: #{tpu_custom_call.1} parent=23 // pred_check
          %p155 = pneg %p36
        $region26: #{tpu_custom_call.1} parent=23 // pred_check_branch
          %157 = sbr.rel (%p155) target = $region28
        $region27: #{tpu_custom_call.1} parent=23 // pred_region
          %s158 = sand.u32 %s26, 1
          %s159 = scalar_lea.sflag [#allocation3], %s158
          %s160 = sand.u32 %s26, 1
          %s161 = smul.addr %s160, 8
          %s162 = scalar_lea.vmem [#allocation2], %s161
          %s164 = ssub.s32 128, 128
          %165 = vsyncadd %s159, %s164
          %s166 = smul.addr %s16, 128
          %s167 = scalar_lea.hbm %s0, %s166
          %s169 = sshll.u32 %s162, 4
          %s170 = int_to_ptr.vmem [resolvable:$true] %s169
          %172 = dma.hbm_to_vmem [thread:$0]  %s167, 128, %s170, %s159
        $region28: #{tpu_custom_call.1} parent=23 // pred_fallthru
          _
      $region24: #{tpu_custom_call.1} parent=5 // pred_fallthru
        _
      %p173 = scmp.le.s32.totalorder 1, %s16
      %p174 = scmp.lt.s32.totalorder %s16, 3
      %p175 = pnand %p173, %p174
      %p176 = pneg %p175
      // Predicated region
      $region29: #{tpu_custom_call.1} parent=5 // pred_check
        _
      $region30: #{tpu_custom_call.1} parent=5 // pred_check_branch
        %178 = sbr.rel (%p175) target = $region32
      $region31: #{tpu_custom_call.1} parent=5 // pred_region
        %s179 = ssub.s32 %s16, 1
        %s180 = sand.u32 %s29, 1
        %s181 = scalar_lea.sflag [#allocation3], %s180
        %s182 = sand.u32 %s29, 1
        %s183 = smul.addr %s182, 8
        %s184 = scalar_lea.vmem [#allocation2], %s183
        // Predicated region
        $region33: #{tpu_custom_call.1} parent=31 // pred_check
          %p185 = pneg %p42
        $region34: #{tpu_custom_call.1} parent=31 // pred_check_branch
          %187 = sbr.rel (%p185) target = $region36
        $region35: #{tpu_custom_call.1} parent=31 // pred_region
          %188 = dma.done %s181, 128
        $region36: #{tpu_custom_call.1} parent=31 // pred_fallthru
          _
        // Predicated region
        $region37: #{tpu_custom_call.1} parent=31 // pred_check
          %p189 = pneg %p63
        $region38: #{tpu_custom_call.1} parent=31 // pred_check_branch
          %191 = sbr.rel (%p189) target = $region40
        $region39: #{tpu_custom_call.1} parent=31 // pred_region
          %192 = dma.done [#allocation6], 8960
        $region40: #{tpu_custom_call.1} parent=31 // pred_fallthru
          _
        // Predicated region
        $region41: #{tpu_custom_call.1} parent=31 // pred_check
          %p193 = pneg %p84
        $region42: #{tpu_custom_call.1} parent=31 // pred_check_branch
          %195 = sbr.rel (%p193) target = $region44
        $region43: #{tpu_custom_call.1} parent=31 // pred_region
          %196 = dma.done [#allocation6], 2560
        $region44: #{tpu_custom_call.1} parent=31 // pred_fallthru
          _
        %s197 = sand.u32 %s29, 1
        %s198 = scalar_lea.sflag [#allocation3], %s197
        %s199 = sand.u32 %s29, 1
        %s200 = smul.addr %s199, 8
        %s201 = scalar_lea.vmem [#allocation2], %s200
        %p202 = pneg %p42
        %p203 = pneg %p39
        %p204 = pneg %p63
        %p205 = pneg %p60
        %p206 = pneg %p84
        %p207 = pneg %p81
        %p208 = pneg %p110
        %p209 = pneg %p107
        %s210 = sand.u32 %s97, 1
        %s211 = scalar_lea.sflag [#allocation4], %s210
        %s212 = sand.u32 %s97, 1
        %s213 = smul.addr %s212, 8
        %s214 = scalar_lea.vmem [#allocation8], %s213
        %v215 = vld [vmem:[%s184] sm:$0xff]
        %v216 = vld [vmem:[#allocation5] sm:$0xff]
        %v217 = vld [vmem:[#allocation5 + $0x8] sm:$0xff]
        %v218 = vld [vmem:[#allocation5 + $0x10] sm:$0xff]
        %v219 = vld [vmem:[#allocation5 + $0x18] sm:$0xff]
        %v220 = vld [vmem:[#allocation5 + $0x20] sm:$0xff]
        %v221 = vld [vmem:[#allocation5 + $0x28] sm:$0xff]
        %v222 = vld [vmem:[#allocation5 + $0x30] sm:$0xff]
        %v223 = vld [vmem:[#allocation5 + $0x38] sm:$0xff]
        %v224 = vld [vmem:[#allocation5 + $0x40] sm:$0xff]
        %v225 = vld [vmem:[#allocation5 + $0x48] sm:$0xff]
        %v226 = vld [vmem:[#allocation5 + $0x50] sm:$0xff]
        %v227 = vld [vmem:[#allocation5 + $0x58] sm:$0xff]
        %v228 = vld [vmem:[#allocation5 + $0x60] sm:$0xff]
        %v229 = vld [vmem:[#allocation5 + $0x68] sm:$0xff]
        %v230 = vld [vmem:[#allocation5 + $0x70] sm:$0xff]
        %v231 = vld [vmem:[#allocation5 + $0x78] sm:$0xff]
        %v232 = vld [vmem:[#allocation5 + $0x80] sm:$0xff]
        %v233 = vld [vmem:[#allocation5 + $0x88] sm:$0xff]
        %v234 = vld [vmem:[#allocation5 + $0x90] sm:$0xff]
        %v235 = vld [vmem:[#allocation5 + $0x98] sm:$0xff]
        %v236 = vld [vmem:[#allocation5 + $0xa0] sm:$0xff]
        %v237 = vld [vmem:[#allocation5 + $0xa8] sm:$0xff]
        %v238 = vld [vmem:[#allocation5 + $0xb0] sm:$0xff]
        %v239 = vld [vmem:[#allocation5 + $0xb8] sm:$0xff]
        %v240 = vld [vmem:[#allocation5 + $0xc0] sm:$0xff]
        %v241 = vld [vmem:[#allocation5 + $0xc8] sm:$0xff]
        %v242 = vld [vmem:[#allocation5 + $0xd0] sm:$0xff]
        %v243 = vld [vmem:[#allocation5 + $0xd8] sm:$0xff]
        %v244 = vld [vmem:[#allocation5 + $0xe0] sm:$0xff]
        %v245 = vld [vmem:[#allocation5 + $0xe8] sm:$0xff]
        %v246 = vld [vmem:[#allocation5 + $0xf0] sm:$0xff]
        %v247 = vld [vmem:[#allocation5 + $0xf8] sm:$0xff]
        %v248 = vld [vmem:[#allocation5 + $0x100] sm:$0xff]
        %v249 = vld [vmem:[#allocation5 + $0x110] sm:$0xff]
        %v250 = vld [vmem:[#allocation5 + $0x120] sm:$0xff]
        %v251 = vld [vmem:[#allocation5 + $0x130] sm:$0xff]
        %v252 = vld [vmem:[#allocation5 + $0x140] sm:$0xff]
        %v253 = vld [vmem:[#allocation5 + $0x150] sm:$0xff]
        %v254 = vld [vmem:[#allocation5 + $0x160] sm:$0xff]
        %v255 = vld [vmem:[#allocation5 + $0x170] sm:$0xff]
        %v256 = vld [vmem:[#allocation5 + $0x180] sm:$0xff]
        %v257 = vld [vmem:[#allocation5 + $0x190] sm:$0xff]
        %v258 = vld [vmem:[#allocation5 + $0x1a0] sm:$0xff]
        %v259 = vld [vmem:[#allocation5 + $0x1b0] sm:$0xff]
        %v260 = vld [vmem:[#allocation5 + $0x1c0] sm:$0xff]
        %v261 = vld [vmem:[#allocation5 + $0x1d0] sm:$0xff]
        %v262 = vld [vmem:[#allocation5 + $0x1e0] sm:$0xff]
        %v263 = vld [vmem:[#allocation5 + $0x1f0] sm:$0xff]
        %v264 = vld [vmem:[#allocation5 + $0x108] sm:$0xff]
        %v265 = vld [vmem:[#allocation5 + $0x118] sm:$0xff]
        %v266 = vld [vmem:[#allocation5 + $0x128] sm:$0xff]
        %v267 = vld [vmem:[#allocation5 + $0x138] sm:$0xff]
        %v268 = vld [vmem:[#allocation5 + $0x148] sm:$0xff]
        %v269 = vld [vmem:[#allocation5 + $0x158] sm:$0xff]
        %v270 = vld [vmem:[#allocation5 + $0x168] sm:$0xff]
        %v271 = vld [vmem:[#allocation5 + $0x178] sm:$0xff]
        %v272 = vld [vmem:[#allocation5 + $0x188] sm:$0xff]
        %v273 = vld [vmem:[#allocation5 + $0x198] sm:$0xff]
        %v274 = vld [vmem:[#allocation5 + $0x1a8] sm:$0xff]
        %v275 = vld [vmem:[#allocation5 + $0x1b8] sm:$0xff]
        %v276 = vld [vmem:[#allocation5 + $0x1c8] sm:$0xff]
        %v277 = vld [vmem:[#allocation5 + $0x1d8] sm:$0xff]
        %v278 = vld [vmem:[#allocation5 + $0x1e8] sm:$0xff]
        %v279 = vld [vmem:[#allocation5 + $0x1f8] sm:$0xff]
        %v280 = vld [vmem:[#allocation5 + $0x200] sm:$0xff]
        %v281 = vld [vmem:[#allocation5 + $0x210] sm:$0xff]
        %v282 = vld [vmem:[#allocation5 + $0x208] sm:$0xff]
        %v283 = vld [vmem:[#allocation5 + $0x218] sm:$0xff]
        %v284 = vld [vmem:[#allocation5 + $0x220] sm:$0xf]
        %v285 = vld [vmem:[#allocation5 + $0x228] sm:$0xf]
        %v286 = vld [vmem:[#allocation7] sm:$0xff]
        %v287 = vld [vmem:[#allocation7 + $0x10] sm:$0xff]
        %v288 = vld [vmem:[#allocation7 + $0x20] sm:$0xff]
        %v289 = vld [vmem:[#allocation7 + $0x30] sm:$0xff]
        %v290 = vld [vmem:[#allocation7 + $0x40] sm:$0xff]
        %v291 = vld [vmem:[#allocation7 + $0x50] sm:$0xff]
        %v292 = vld [vmem:[#allocation7 + $0x60] sm:$0xff]
        %v293 = vld [vmem:[#allocation7 + $0x70] sm:$0xff]
        %v294 = vld [vmem:[#allocation7 + $0x80] ss:$0 sm:$0xff]
        %v295 = vld [vmem:[#allocation7 + $0x81] ss:$0 sm:$0xff]
        %v296 = vld [vmem:[#allocation7 + $0x82] ss:$0 sm:$0xff]
        %v297 = vld [vmem:[#allocation7 + $0x83] ss:$0 sm:$0xff]
        %v298 = vld [vmem:[#allocation7 + $0x84] ss:$0 sm:$0xff]
        %v299 = vld [vmem:[#allocation7 + $0x85] ss:$0 sm:$0xff]
        %v300 = vld [vmem:[#allocation7 + $0x86] ss:$0 sm:$0xff]
        %v301 = vld [vmem:[#allocation7 + $0x87] ss:$0 sm:$0xff]
        %v302 = vld [vmem:[#allocation7 + $0x90] ss:$0 sm:$0xff]
        %s303 = scalar_lea.vmem [#allocation7], 145
        %v304 = vld [vmem:[%s303] ss:$8 sm:$0x3]
        %vm305 = vcmask 130048
        %v307 = vsel %vm305, %v215, 0
        %309 = vmatprep.subr.mxu0 0.0
        %310 = vmatpush1.msra.mxu0 %v286
        %311 = vmatprep.subr.mxu0 0.0
        %312 = vmatpush1.msra.mxu0 %v287
        %313 = vmatprep.subr.mxu0 0.0
        %314 = vmatpush1.msra.mxu0 0.0
        %315 = vmatprep.subr.mxu0 0.0
        %316 = vmatpush1.msra.mxu0 0.0
        %317 = vmatprep.subr.mxu0 0.0
        %318 = vmatpush1.msra.mxu0 0.0
        %319 = vmatprep.subr.mxu0 0.0
        %320 = vmatpush1.msra.mxu0 0.0
        %321 = vmatprep.subr.mxu0 0.0
        %322 = vmatpush1.msra.mxu0 0.0
        %323 = vmatprep.subr.mxu0 0.0
        %324 = vmatpush1.msra.mxu0 0.0
        %325 = vmatprep.subr.mxu0 0.0
        %326 = vmatpush1.msra.mxu0 0.0
        %327 = vmatprep.subr.mxu0 0.0
        %328 = vmatpush1.msra.mxu0 0.0
        %329 = vmatprep.subr.mxu0 0.0
        %330 = vmatpush1.msra.mxu0 0.0
        %331 = vmatprep.subr.mxu0 0.0
        %332 = vmatpush1.msra.mxu0 0.0
        %333 = vmatprep.subr.mxu0 0.0
        %334 = vmatpush1.msra.mxu0 0.0
        %335 = vmatprep.subr.mxu0 0.0
        %336 = vmatpush1.msra.mxu0 0.0
        %337 = vmatprep.subr.mxu0 0.0
        %338 = vmatpush1.msra.mxu0 0.0
        %339 = vmatprep.subr.mxu0 0.0
        %340 = vmatpush1.msra.mxu0 0.0
        %341 = vmatprep.subr.mxu0 0.0
        %342 = vmatpush1.msra.mxu0 0.0
        %343 = vmatprep.subr.mxu0 0.0
        %344 = vmatpush1.msra.mxu0 0.0
        %345 = vmatprep.subr.mxu0 0.0
        %346 = vmatpush1.msra.mxu0 0.0
        %347 = vmatprep.subr.mxu0 0.0
        %348 = vmatpush1.msra.mxu0 0.0
        %349 = vmatprep.subr.mxu0 0.0
        %350 = vmatpush1.msra.mxu0 0.0
        %351 = vmatprep.subr.mxu0 0.0
        %352 = vmatpush1.msra.mxu0 0.0
        %353 = vmatprep.subr.mxu0 0.0
        %354 = vmatpush1.msra.mxu0 0.0
        %355 = vmatprep.subr.mxu0 0.0
        %356 = vmatpush1.msra.mxu0 0.0
        %357 = vmatprep.subr.mxu0 0.0
        %358 = vmatpush1.msra.mxu0 0.0
        %359 = vmatprep.subr.mxu0 0.0
        %360 = vmatpush1.msra.mxu0 0.0
        %361 = vmatprep.subr.mxu0 0.0
        %362 = vmatpush1.msra.mxu0 0.0
        %363 = vmatprep.subr.mxu0 0.0
        %364 = vmatpush1.msra.mxu0 0.0
        %365 = vmatprep.subr.mxu0 0.0
        %366 = vmatpush1.msra.mxu0 0.0
        %367 = vmatprep.subr.mxu0 0.0
        %368 = vmatpush1.msra.mxu0 0.0
        %369 = vmatprep.subr.mxu0 0.0
        %370 = vmatpush1.msra.mxu0 0.0
        %371 = vmatprep.subr.mxu0 0.0
        %372 = vmatpush1.msra.mxu0 0.0
        %373 = vmatprep.mubr.f32.mxu0 0.0
        %374 = vmatmul.mubr.f32.gmra.mrb[0].mxu0 %v307
        %v375 = vpop.f32.mrb[0].mxu0
        %v376 = vadd.f32 %v294, %v375
        %v377 = vpop.f32.mrb[0].mxu0
        %378 = vdwg.mxu0
        %vm379 = vcmp.gt.f32.partialorder %v376, 0.0
        %v380 = vmin.f32 %v376, 0.0
        %v381 = vmul.f32 %v380, 1.442695
        %v382 = vpow.pop %v381
        %v383 = vsub.f32 %v382, 1.0
        %v384 = vsel %vm379, %v376, %v383
        %vm385 = vcmask 261120
        %v387 = vsel %vm385, %v384, 0
        %389 = vmatprep.subr.mxu0 0.0
        %390 = vmatpush1.msra.mxu0 %v288
        %391 = vmatprep.subr.mxu0 0.0
        %392 = vmatpush1.msra.mxu0 %v289
        %393 = vmatprep.subr.mxu0 0.0
        %394 = vmatpush1.msra.mxu0 %v290
        %395 = vmatprep.subr.mxu0 0.0
        %396 = vmatpush1.msra.mxu0 %v291
        %397 = vmatprep.subr.mxu0 0.0
        %398 = vmatpush1.msra.mxu0 0.0
        %399 = vmatprep.subr.mxu0 0.0
        %400 = vmatpush1.msra.mxu0 0.0
        %401 = vmatprep.subr.mxu0 0.0
        %402 = vmatpush1.msra.mxu0 0.0
        %403 = vmatprep.subr.mxu0 0.0
        %404 = vmatpush1.msra.mxu0 0.0
        %405 = vmatprep.subr.mxu0 0.0
        %406 = vmatpush1.msra.mxu0 0.0
        %407 = vmatprep.subr.mxu0 0.0
        %408 = vmatpush1.msra.mxu0 0.0
        %409 = vmatprep.subr.mxu0 0.0
        %410 = vmatpush1.msra.mxu0 0.0
        %411 = vmatprep.subr.mxu0 0.0
        %412 = vmatpush1.msra.mxu0 0.0
        %413 = vmatprep.subr.mxu0 0.0
        %414 = vmatpush1.msra.mxu0 0.0
        %415 = vmatprep.subr.mxu0 0.0
        %416 = vmatpush1.msra.mxu0 0.0
        %417 = vmatprep.subr.mxu0 0.0
        %418 = vmatpush1.msra.mxu0 0.0
        %419 = vmatprep.subr.mxu0 0.0
        %420 = vmatpush1.msra.mxu0 0.0
        %421 = vmatprep.subr.mxu0 0.0
        %422 = vmatpush1.msra.mxu0 0.0
        %423 = vmatprep.subr.mxu0 0.0
        %424 = vmatpush1.msra.mxu0 0.0
        %425 = vmatprep.subr.mxu0 0.0
        %426 = vmatpush1.msra.mxu0 0.0
        %427 = vmatprep.subr.mxu0 0.0
        %428 = vmatpush1.msra.mxu0 0.0
        %429 = vmatprep.subr.mxu0 0.0
        %430 = vmatpush1.msra.mxu0 0.0
        %431 = vmatprep.subr.mxu0 0.0
        %432 = vmatpush1.msra.mxu0 0.0
        %433 = vmatprep.subr.mxu0 0.0
        %434 = vmatpush1.msra.mxu0 0.0
        %435 = vmatprep.subr.mxu0 0.0
        %436 = vmatpush1.msra.mxu0 0.0
        %437 = vmatprep.subr.mxu0 0.0
        %438 = vmatpush1.msra.mxu0 0.0
        %439 = vmatprep.subr.mxu0 0.0
        %440 = vmatpush1.msra.mxu0 0.0
        %441 = vmatprep.subr.mxu0 0.0
        %442 = vmatpush1.msra.mxu0 0.0
        %443 = vmatprep.subr.mxu0 0.0
        %444 = vmatpush1.msra.mxu0 0.0
        %445 = vmatprep.subr.mxu0 0.0
        %446 = vmatpush1.msra.mxu0 0.0
        %447 = vmatprep.subr.mxu0 0.0
        %448 = vmatpush1.msra.mxu0 0.0
        %449 = vmatprep.subr.mxu0 0.0
        %450 = vmatpush1.msra.mxu0 0.0
        %451 = vmatprep.subr.mxu0 0.0
        %452 = vmatpush1.msra.mxu0 0.0
        %453 = vmatprep.mubr.f32.mxu0 0.0
        %454 = vmatmul.mubr.f32.gmra.mrb[0].mxu0 %v387
        %v455 = vpop.f32.mrb[0].mxu0
        %v456 = vadd.f32 %v295, %v455
        %v457 = vpop.f32.mrb[0].mxu0
        %458 = vdwg.mxu0
        %v459 = vxor.u32 %v456, 2147483648
        %v460 = vmul.f32 %v459, 1.442695
        %v461 = vpow.pop %v460
        %v462 = vadd.f32 %v461, 1.0
        %v463 = vrcp.pop %v462
        %v464 = vmul.f32 1.0, %v463
        %466 = vrot.lane.b32.xlu0 %v464, 124
        %v467 = vpop.permute.xlu0 %466
        %v469 = vmul.f32 %v456, %v467
        %470 = vmatprep.subr.mxu0 0.0
        %471 = vmatpush1.msra.mxu0 %v292
        %472 = vmatprep.subr.mxu0 0.0
        %473 = vmatpush1.msra.mxu0 %v293
        %474 = vmatprep.subr.mxu0 0.0
        %475 = vmatpush1.msra.mxu0 0.0
        %476 = vmatprep.subr.mxu0 0.0
        %477 = vmatpush1.msra.mxu0 0.0
        %478 = vmatprep.subr.mxu0 0.0
        %479 = vmatpush1.msra.mxu0 0.0
        %480 = vmatprep.subr.mxu0 0.0
        %481 = vmatpush1.msra.mxu0 0.0
        %482 = vmatprep.subr.mxu0 0.0
        %483 = vmatpush1.msra.mxu0 0.0
        %484 = vmatprep.subr.mxu0 0.0
        %485 = vmatpush1.msra.mxu0 0.0
        %486 = vmatprep.subr.mxu0 0.0
        %487 = vmatpush1.msra.mxu0 0.0
        %488 = vmatprep.subr.mxu0 0.0
        %489 = vmatpush1.msra.mxu0 0.0
        %490 = vmatprep.subr.mxu0 0.0
        %491 = vmatpush1.msra.mxu0 0.0
        %492 = vmatprep.subr.mxu0 0.0
        %493 = vmatpush1.msra.mxu0 0.0
        %494 = vmatprep.subr.mxu0 0.0
        %495 = vmatpush1.msra.mxu0 0.0
        %496 = vmatprep.subr.mxu0 0.0
        %497 = vmatpush1.msra.mxu0 0.0
        %498 = vmatprep.subr.mxu0 0.0
        %499 = vmatpush1.msra.mxu0 0.0
        %500 = vmatprep.subr.mxu0 0.0
        %501 = vmatpush1.msra.mxu0 0.0
        %502 = vmatprep.subr.mxu0 0.0
        %503 = vmatpush1.msra.mxu0 0.0
        %504 = vmatprep.subr.mxu0 0.0
        %505 = vmatpush1.msra.mxu0 0.0
        %506 = vmatprep.subr.mxu0 0.0
        %507 = vmatpush1.msra.mxu0 0.0
        %508 = vmatprep.subr.mxu0 0.0
        %509 = vmatpush1.msra.mxu0 0.0
        %510 = vmatprep.subr.mxu0 0.0
        %511 = vmatpush1.msra.mxu0 0.0
        %512 = vmatprep.subr.mxu0 0.0
        %513 = vmatpush1.msra.mxu0 0.0
        %514 = vmatprep.subr.mxu0 0.0
        %515 = vmatpush1.msra.mxu0 0.0
        %516 = vmatprep.subr.mxu0 0.0
        %517 = vmatpush1.msra.mxu0 0.0
        %518 = vmatprep.subr.mxu0 0.0
        %519 = vmatpush1.msra.mxu0 0.0
        %520 = vmatprep.subr.mxu0 0.0
        %521 = vmatpush1.msra.mxu0 0.0
        %522 = vmatprep.subr.mxu0 0.0
        %523 = vmatpush1.msra.mxu0 0.0
        %524 = vmatprep.subr.mxu0 0.0
        %525 = vmatpush1.msra.mxu0 0.0
        %526 = vmatprep.subr.mxu0 0.0
        %527 = vmatpush1.msra.mxu0 0.0
        %528 = vmatprep.subr.mxu0 0.0
        %529 = vmatpush1.msra.mxu0 0.0
        %530 = vmatprep.subr.mxu0 0.0
        %531 = vmatpush1.msra.mxu0 0.0
        %532 = vmatprep.subr.mxu0 0.0
        %533 = vmatpush1.msra.mxu0 0.0
        %534 = vmatprep.mubr.f32.mxu0 0.0
        %535 = vmatmul.mubr.f32.gmra.mrb[0].mxu0 %v307
        %v536 = vpop.f32.mrb[0].mxu0
        %v537 = vadd.f32 0.0, %v536
        %v538 = vpop.f32.mrb[0].mxu0
        %539 = vdwg.mxu0
        %v540 = vadd.f32 %v469, %v537
        %v541 = vadd.f32 %v540, %v296
        %vm542 = vcmask 31744
        %v543 = vsel %vm542, %v541, 0.0
        %544 = vadd.xlane.f32.xlu0 %v543
        %v545 = vpop.xlane.xlu0 %544
        %v546 = vrcp.pop 4.0
        %v547 = vmul.f32 %v545, %v546
        %v548 = vsub.f32 %v541, %v547
        %v549 = vmul.f32 %v548, %v548
        %v550 = vsel %vm542, %v549, 0.0
        %551 = vadd.xlane.f32.xlu0 %v550
        %v552 = vpop.xlane.xlu0 %551
        %v553 = vmul.f32 %v552, %v546
        %v554 = vadd.f32 %v553, 1e-05
        %v555 = vrsqrt.pop %v554
        %v556 = vmul.f32 %v548, %v555
        %v557 = vmul.f32 %v556, %v297
        %v558 = vadd.f32 %v557, %v298
        %v559 = vsel %vm542, %v558, -inf
        %560 = vmax.xlane.f32.xlu0 %v559
        %v561 = vpop.xlane.xlu0 %560
        %v562 = vsub.f32 %v558, %v561
        %v563 = vmul.f32 %v562, 1.442695
        %v564 = vpow.pop %v563
        %v565 = vsel %vm542, %v564, 0.0
        %566 = vadd.xlane.f32.xlu0 %v565
        %v567 = vpop.xlane.xlu0 %566
        %v568 = vrcp.pop %v567
        %v569 = vmul.f32 %v564, %v568
        %570 = vmatprep.subr.mxu0 0.0
        %571 = vmatpush1.msra.mxu0 %v280
        %572 = vmatprep.subr.mxu0 0.0
        %573 = vmatpush1.msra.mxu0 %v281
        %574 = vmatprep.subr.mxu0 0.0
        %575 = vmatpush1.msra.mxu0 0.0
        %576 = vmatprep.subr.mxu0 0.0
        %577 = vmatpush1.msra.mxu0 0.0
        %578 = vmatprep.subr.mxu0 0.0
        %579 = vmatpush1.msra.mxu0 0.0
        %580 = vmatprep.subr.mxu0 0.0
        %581 = vmatpush1.msra.mxu0 0.0
        %582 = vmatprep.subr.mxu0 0.0
        %583 = vmatpush1.msra.mxu0 0.0
        %584 = vmatprep.subr.mxu0 0.0
        %585 = vmatpush1.msra.mxu0 0.0
        %586 = vmatprep.subr.mxu0 0.0
        %587 = vmatpush1.msra.mxu0 0.0
        %588 = vmatprep.subr.mxu0 0.0
        %589 = vmatpush1.msra.mxu0 0.0
        %590 = vmatprep.subr.mxu0 0.0
        %591 = vmatpush1.msra.mxu0 0.0
        %592 = vmatprep.subr.mxu0 0.0
        %593 = vmatpush1.msra.mxu0 0.0
        %594 = vmatprep.subr.mxu0 0.0
        %595 = vmatpush1.msra.mxu0 0.0
        %596 = vmatprep.subr.mxu0 0.0
        %597 = vmatpush1.msra.mxu0 0.0
        %598 = vmatprep.subr.mxu0 0.0
        %599 = vmatpush1.msra.mxu0 0.0
        %600 = vmatprep.subr.mxu0 0.0
        %601 = vmatpush1.msra.mxu0 0.0
        %602 = vmatprep.subr.mxu0 0.0
        %603 = vmatpush1.msra.mxu0 0.0
        %604 = vmatprep.subr.mxu0 0.0
        %605 = vmatpush1.msra.mxu0 0.0
        %606 = vmatprep.subr.mxu0 0.0
        %607 = vmatpush1.msra.mxu0 0.0
        %608 = vmatprep.subr.mxu0 0.0
        %609 = vmatpush1.msra.mxu0 0.0
        %610 = vmatprep.subr.mxu0 0.0
        %611 = vmatpush1.msra.mxu0 0.0
        %612 = vmatprep.subr.mxu0 0.0
        %613 = vmatpush1.msra.mxu0 0.0
        %614 = vmatprep.subr.mxu0 0.0
        %615 = vmatpush1.msra.mxu0 0.0
        %616 = vmatprep.subr.mxu0 0.0
        %617 = vmatpush1.msra.mxu0 0.0
        %618 = vmatprep.subr.mxu0 0.0
        %619 = vmatpush1.msra.mxu0 0.0
        %620 = vmatprep.subr.mxu0 0.0
        %621 = vmatpush1.msra.mxu0 0.0
        %622 = vmatprep.subr.mxu0 0.0
        %623 = vmatpush1.msra.mxu0 0.0
        %624 = vmatprep.subr.mxu0 0.0
        %625 = vmatpush1.msra.mxu0 0.0
        %626 = vmatprep.subr.mxu0 0.0
        %627 = vmatpush1.msra.mxu0 0.0
        %628 = vmatprep.subr.mxu0 0.0
        %629 = vmatpush1.msra.mxu0 0.0
        %630 = vmatprep.subr.mxu0 0.0
        %631 = vmatpush1.msra.mxu0 0.0
        %632 = vmatprep.subr.mxu0 0.0
        %633 = vmatpush1.msra.mxu0 0.0
        %634 = vmatprep.mubr.f32.mxu0 0.0
        %635 = vmatmul.mubr.f32.gmra.mrb[0].mxu0 %v307
        %v636 = vpop.f32.mrb[0].mxu0
        %v637 = vadd.f32 %v299, %v636
        %v638 = vpop.f32.mrb[0].mxu0
        %639 = vdwg.mxu0
        %vm640 = vcmp.gt.f32.partialorder %v637, 0.0
        %v641 = vmin.f32 %v637, 0.0
        %v642 = vmul.f32 %v641, 1.442695
        %v643 = vpow.pop %v642
        %v644 = vsub.f32 %v643, 1.0
        %v645 = vsel %vm640, %v637, %v644
        %v647 = vlaneseq
        %v648 = vshrl.u32 %v647, 7
        %v649 = vsub.s32 0, %v648
        %v650 = vrot.slane %v304, %v649
        %v651 = vlaneseq
        %v652 = vshrl.u32 %v651, 7
        %v653 = vsub.s32 1, %v652
        %v654 = vrot.slane %v304, %v653
        %657 = vmatprep.subr.mxu0 %v217
        %658 = vmatpush1.msra.mxu0 %v216
        %659 = vmatprep.subr.mxu0 %v219
        %660 = vmatpush1.msra.mxu0 %v218
        %661 = vmatprep.subr.mxu0 %v221
        %662 = vmatpush1.msra.mxu0 %v220
        %663 = vmatprep.subr.mxu0 %v223
        %664 = vmatpush1.msra.mxu0 %v222
        %665 = vmatprep.subr.mxu0 %v225
        %666 = vmatpush1.msra.mxu0 %v224
        %667 = vmatprep.subr.mxu0 %v227
        %668 = vmatpush1.msra.mxu0 %v226
        %669 = vmatprep.subr.mxu0 %v229
        %670 = vmatpush1.msra.mxu0 %v228
        %671 = vmatprep.subr.mxu0 %v231
        %672 = vmatpush1.msra.mxu0 %v230
        %673 = vmatprep.subr.mxu0 %v233
        %674 = vmatpush1.msra.mxu0 %v232
        %675 = vmatprep.subr.mxu0 %v235
        %676 = vmatpush1.msra.mxu0 %v234
        %677 = vmatprep.subr.mxu0 %v237
        %678 = vmatpush1.msra.mxu0 %v236
        %679 = vmatprep.subr.mxu0 %v239
        %680 = vmatpush1.msra.mxu0 %v238
        %681 = vmatprep.subr.mxu0 %v241
        %682 = vmatpush1.msra.mxu0 %v240
        %683 = vmatprep.subr.mxu0 %v243
        %684 = vmatpush1.msra.mxu0 %v242
        %685 = vmatprep.subr.mxu0 %v245
        %686 = vmatpush1.msra.mxu0 %v244
        %687 = vmatprep.subr.mxu0 %v247
        %688 = vmatpush1.msra.mxu0 %v246
        %689 = vmatprep.subr.mxu0 0.0
        %690 = vmatpush1.msra.mxu0 0.0
        %691 = vmatprep.subr.mxu0 0.0
        %692 = vmatpush1.msra.mxu0 0.0
        %693 = vmatprep.subr.mxu0 0.0
        %694 = vmatpush1.msra.mxu0 0.0
        %695 = vmatprep.subr.mxu0 0.0
        %696 = vmatpush1.msra.mxu0 0.0
        %697 = vmatprep.subr.mxu0 0.0
        %698 = vmatpush1.msra.mxu0 0.0
        %699 = vmatprep.subr.mxu0 0.0
        %700 = vmatpush1.msra.mxu0 0.0
        %701 = vmatprep.subr.mxu0 0.0
        %702 = vmatpush1.msra.mxu0 0.0
        %703 = vmatprep.subr.mxu0 0.0
        %704 = vmatpush1.msra.mxu0 0.0
        %705 = vmatprep.subr.mxu0 0.0
        %706 = vmatpush1.msra.mxu0 0.0
        %707 = vmatprep.subr.mxu0 0.0
        %708 = vmatpush1.msra.mxu0 0.0
        %709 = vmatprep.subr.mxu0 0.0
        %710 = vmatpush1.msra.mxu0 0.0
        %711 = vmatprep.subr.mxu0 0.0
        %712 = vmatpush1.msra.mxu0 0.0
        %713 = vmatprep.subr.mxu0 0.0
        %714 = vmatpush1.msra.mxu0 0.0
        %715 = vmatprep.subr.mxu0 0.0
        %716 = vmatpush1.msra.mxu0 0.0
        %717 = vmatprep.subr.mxu0 0.0
        %718 = vmatpush1.msra.mxu0 0.0
        %719 = vmatprep.subr.mxu0 0.0
        %720 = vmatpush1.msra.mxu0 0.0
        %721 = vmatprep.mubr.f32.mxu0 0.0
        %722 = vmatmul.mubr.f32.gmra.mrb[0].mxu0 %v645
        %v723 = vpop.f32.mrb[0].mxu0
        %v724 = vadd.f32 %v650, %v723
        %v725 = vpop.f32.mrb[0].mxu0
        %v726 = vadd.f32 %v654, %v725
        %727 = vdwg.mxu0
        %v728 = vxor.u32 %v726, 2147483648
        %v729 = vmul.f32 %v728, 1.442695
        %v730 = vpow.pop %v729
        %v731 = vadd.f32 %v730, 1.0
        %v732 = vrcp.pop %v731
        %v733 = vmul.f32 1.0, %v732
        %v734 = vmul.f32 %v724, %v733
        %735 = vmatprep.subr.mxu0 0.0
        %736 = vmatpush1.msra.mxu0 %v282
        %737 = vmatprep.subr.mxu0 0.0
        %738 = vmatpush1.msra.mxu0 %v283
        %739 = vmatprep.subr.mxu0 0.0
        %740 = vmatpush1.msra.mxu0 0.0
        %741 = vmatprep.subr.mxu0 0.0
        %742 = vmatpush1.msra.mxu0 0.0
        %743 = vmatprep.subr.mxu0 0.0
        %744 = vmatpush1.msra.mxu0 0.0
        %745 = vmatprep.subr.mxu0 0.0
        %746 = vmatpush1.msra.mxu0 0.0
        %747 = vmatprep.subr.mxu0 0.0
        %748 = vmatpush1.msra.mxu0 0.0
        %749 = vmatprep.subr.mxu0 0.0
        %750 = vmatpush1.msra.mxu0 0.0
        %751 = vmatprep.subr.mxu0 0.0
        %752 = vmatpush1.msra.mxu0 0.0
        %753 = vmatprep.subr.mxu0 0.0
        %754 = vmatpush1.msra.mxu0 0.0
        %755 = vmatprep.subr.mxu0 0.0
        %756 = vmatpush1.msra.mxu0 0.0
        %757 = vmatprep.subr.mxu0 0.0
        %758 = vmatpush1.msra.mxu0 0.0
        %759 = vmatprep.subr.mxu0 0.0
        %760 = vmatpush1.msra.mxu0 0.0
        %761 = vmatprep.subr.mxu0 0.0
        %762 = vmatpush1.msra.mxu0 0.0
        %763 = vmatprep.subr.mxu0 0.0
        %764 = vmatpush1.msra.mxu0 0.0
        %765 = vmatprep.subr.mxu0 0.0
        %766 = vmatpush1.msra.mxu0 0.0
        %767 = vmatprep.subr.mxu0 0.0
        %768 = vmatpush1.msra.mxu0 0.0
        %769 = vmatprep.subr.mxu0 0.0
        %770 = vmatpush1.msra.mxu0 0.0
        %771 = vmatprep.subr.mxu0 0.0
        %772 = vmatpush1.msra.mxu0 0.0
        %773 = vmatprep.subr.mxu0 0.0
        %774 = vmatpush1.msra.mxu0 0.0
        %775 = vmatprep.subr.mxu0 0.0
        %776 = vmatpush1.msra.mxu0 0.0
        %777 = vmatprep.subr.mxu0 0.0
        %778 = vmatpush1.msra.mxu0 0.0
        %779 = vmatprep.subr.mxu0 0.0
        %780 = vmatpush1.msra.mxu0 0.0
        %781 = vmatprep.subr.mxu0 0.0
        %782 = vmatpush1.msra.mxu0 0.0
        %783 = vmatprep.subr.mxu0 0.0
        %784 = vmatpush1.msra.mxu0 0.0
        %785 = vmatprep.subr.mxu0 0.0
        %786 = vmatpush1.msra.mxu0 0.0
        %787 = vmatprep.subr.mxu0 0.0
        %788 = vmatpush1.msra.mxu0 0.0
        %789 = vmatprep.subr.mxu0 0.0
        %790 = vmatpush1.msra.mxu0 0.0
        %791 = vmatprep.subr.mxu0 0.0
        %792 = vmatpush1.msra.mxu0 0.0
        %793 = vmatprep.subr.mxu0 0.0
        %794 = vmatpush1.msra.mxu0 0.0
        %795 = vmatprep.subr.mxu0 0.0
        %796 = vmatpush1.msra.mxu0 0.0
        %797 = vmatprep.subr.mxu0 0.0
        %798 = vmatpush1.msra.mxu0 0.0
        %799 = vmatprep.mubr.f32.mxu0 0.0
        %800 = vmatmul.mubr.f32.gmra.mrb[0].mxu0 %v307
        %v801 = vpop.f32.mrb[0].mxu0
        %v802 = vadd.f32 0.0, %v801
        %v803 = vpop.f32.mrb[0].mxu0
        %804 = vdwg.mxu0
        %v805 = vadd.f32 %v734, %v802
        %v806 = vadd.f32 %v805, %v300
        %807 = vmatprep.subr.mxu0 0.0
        %808 = vmatpush1.msra.mxu0 %v248
        %809 = vmatprep.subr.mxu0 0.0
        %810 = vmatpush1.msra.mxu0 %v249
        %811 = vmatprep.subr.mxu0 0.0
        %812 = vmatpush1.msra.mxu0 %v250
        %813 = vmatprep.subr.mxu0 0.0
        %814 = vmatpush1.msra.mxu0 %v251
        %815 = vmatprep.subr.mxu0 0.0
        %816 = vmatpush1.msra.mxu0 %v252
        %817 = vmatprep.subr.mxu0 0.0
        %818 = vmatpush1.msra.mxu0 %v253
        %819 = vmatprep.subr.mxu0 0.0
        %820 = vmatpush1.msra.mxu0 %v254
        %821 = vmatprep.subr.mxu0 0.0
        %822 = vmatpush1.msra.mxu0 %v255
        %823 = vmatprep.subr.mxu0 0.0
        %824 = vmatpush1.msra.mxu0 %v256
        %825 = vmatprep.subr.mxu0 0.0
        %826 = vmatpush1.msra.mxu0 %v257
        %827 = vmatprep.subr.mxu0 0.0
        %828 = vmatpush1.msra.mxu0 %v258
        %829 = vmatprep.subr.mxu0 0.0
        %830 = vmatpush1.msra.mxu0 %v259
        %831 = vmatprep.subr.mxu0 0.0
        %832 = vmatpush1.msra.mxu0 %v260
        %833 = vmatprep.subr.mxu0 0.0
        %834 = vmatpush1.msra.mxu0 %v261
        %835 = vmatprep.subr.mxu0 0.0
        %836 = vmatpush1.msra.mxu0 %v262
        %837 = vmatprep.subr.mxu0 0.0
        %838 = vmatpush1.msra.mxu0 %v263
        %839 = vmatprep.subr.mxu0 0.0
        %840 = vmatpush1.msra.mxu0 0.0
        %841 = vmatprep.subr.mxu0 0.0
        %842 = vmatpush1.msra.mxu0 0.0
        %843 = vmatprep.subr.mxu0 0.0
        %844 = vmatpush1.msra.mxu0 0.0
        %845 = vmatprep.subr.mxu0 0.0
        %846 = vmatpush1.msra.mxu0 0.0
        %847 = vmatprep.subr.mxu0 0.0
        %848 = vmatpush1.msra.mxu0 0.0
        %849 = vmatprep.subr.mxu0 0.0
        %850 = vmatpush1.msra.mxu0 0.0
        %851 = vmatprep.subr.mxu0 0.0
        %852 = vmatpush1.msra.mxu0 0.0
        %853 = vmatprep.subr.mxu0 0.0
        %854 = vmatpush1.msra.mxu0 0.0
        %855 = vmatprep.subr.mxu0 0.0
        %856 = vmatpush1.msra.mxu0 0.0
        %857 = vmatprep.subr.mxu0 0.0
        %858 = vmatpush1.msra.mxu0 0.0
        %859 = vmatprep.subr.mxu0 0.0
        %860 = vmatpush1.msra.mxu0 0.0
        %861 = vmatprep.subr.mxu0 0.0
        %862 = vmatpush1.msra.mxu0 0.0
        %863 = vmatprep.subr.mxu0 0.0
        %864 = vmatpush1.msra.mxu0 0.0
        %865 = vmatprep.subr.mxu0 0.0
        %866 = vmatpush1.msra.mxu0 0.0
        %867 = vmatprep.subr.mxu0 0.0
        %868 = vmatpush1.msra.mxu0 0.0
        %869 = vmatprep.subr.mxu0 0.0
        %870 = vmatpush1.msra.mxu0 0.0
        %871 = vmatprep.mubr.f32.mxu0 0.0
        %872 = vmatmul.mubr.f32.gmra.mrb[0].mxu0 %v806
        %v873 = vpop.f32.mrb[0].mxu0
        %v874 = vadd.f32 0.0, %v873
        %v875 = vpop.f32.mrb[0].mxu0
        %876 = vdwg.mxu0
        %v877 = vsub.f32 %v806, %v874
        %v878 = vmul.f32 %v877, %v877
        %879 = vmatprep.subr.mxu0 0.0
        %880 = vmatpush1.msra.mxu0 %v248
        %881 = vmatprep.subr.mxu0 0.0
        %882 = vmatpush1.msra.mxu0 %v249
        %883 = vmatprep.subr.mxu0 0.0
        %884 = vmatpush1.msra.mxu0 %v250
        %885 = vmatprep.subr.mxu0 0.0
        %886 = vmatpush1.msra.mxu0 %v251
        %887 = vmatprep.subr.mxu0 0.0
        %888 = vmatpush1.msra.mxu0 %v252
        %889 = vmatprep.subr.mxu0 0.0
        %890 = vmatpush1.msra.mxu0 %v253
        %891 = vmatprep.subr.mxu0 0.0
        %892 = vmatpush1.msra.mxu0 %v254
        %893 = vmatprep.subr.mxu0 0.0
        %894 = vmatpush1.msra.mxu0 %v255
        %895 = vmatprep.subr.mxu0 0.0
        %896 = vmatpush1.msra.mxu0 %v256
        %897 = vmatprep.subr.mxu0 0.0
        %898 = vmatpush1.msra.mxu0 %v257
        %899 = vmatprep.subr.mxu0 0.0
        %900 = vmatpush1.msra.mxu0 %v258
        %901 = vmatprep.subr.mxu0 0.0
        %902 = vmatpush1.msra.mxu0 %v259
        %903 = vmatprep.subr.mxu0 0.0
        %904 = vmatpush1.msra.mxu0 %v260
        %905 = vmatprep.subr.mxu0 0.0
        %906 = vmatpush1.msra.mxu0 %v261
        %907 = vmatprep.subr.mxu0 0.0
        %908 = vmatpush1.msra.mxu0 %v262
        %909 = vmatprep.subr.mxu0 0.0
        %910 = vmatpush1.msra.mxu0 %v263
        %911 = vmatprep.subr.mxu0 0.0
        %912 = vmatpush1.msra.mxu0 0.0
        %913 = vmatprep.subr.mxu0 0.0
        %914 = vmatpush1.msra.mxu0 0.0
        %915 = vmatprep.subr.mxu0 0.0
        %916 = vmatpush1.msra.mxu0 0.0
        %917 = vmatprep.subr.mxu0 0.0
        %918 = vmatpush1.msra.mxu0 0.0
        %919 = vmatprep.subr.mxu0 0.0
        %920 = vmatpush1.msra.mxu0 0.0
        %921 = vmatprep.subr.mxu0 0.0
        %922 = vmatpush1.msra.mxu0 0.0
        %923 = vmatprep.subr.mxu0 0.0
        %924 = vmatpush1.msra.mxu0 0.0
        %925 = vmatprep.subr.mxu0 0.0
        %926 = vmatpush1.msra.mxu0 0.0
        %927 = vmatprep.subr.mxu0 0.0
        %928 = vmatpush1.msra.mxu0 0.0
        %929 = vmatprep.subr.mxu0 0.0
        %930 = vmatpush1.msra.mxu0 0.0
        %931 = vmatprep.subr.mxu0 0.0
        %932 = vmatpush1.msra.mxu0 0.0
        %933 = vmatprep.subr.mxu0 0.0
        %934 = vmatpush1.msra.mxu0 0.0
        %935 = vmatprep.subr.mxu0 0.0
        %936 = vmatpush1.msra.mxu0 0.0
        %937 = vmatprep.subr.mxu0 0.0
        %938 = vmatpush1.msra.mxu0 0.0
        %939 = vmatprep.subr.mxu0 0.0
        %940 = vmatpush1.msra.mxu0 0.0
        %941 = vmatprep.subr.mxu0 0.0
        %942 = vmatpush1.msra.mxu0 0.0
        %943 = vmatprep.mubr.f32.mxu0 0.0
        %944 = vmatmul.mubr.f32.gmra.mrb[0].mxu0 %v878
        %v945 = vpop.f32.mrb[0].mxu0
        %v946 = vadd.f32 1e-05, %v945
        %v947 = vpop.f32.mrb[0].mxu0
        %948 = vdwg.mxu0
        %v949 = vrsqrt.pop %v946
        %v950 = vmul.f32 %v877, %v949
        %v951 = vmul.f32 %v950, %v301
        %v952 = vadd.f32 %v951, %v302
        %v954 = vsel %vm542, %v569, 0
        %vm956 = vcmask 1043456
        %v958 = vsel %vm956, %v284, 0
        %960 = vmatprep.subr.mxu0 0.0
        %961 = vmatpush1.msra.mxu0 %v958
        %962 = vmatprep.subr.mxu0 0.0
        %963 = vmatpush1.msra.mxu0 0.0
        %964 = vmatprep.subr.mxu0 0.0
        %965 = vmatpush1.msra.mxu0 0.0
        %966 = vmatprep.subr.mxu0 0.0
        %967 = vmatpush1.msra.mxu0 0.0
        %968 = vmatprep.subr.mxu0 0.0
        %969 = vmatpush1.msra.mxu0 0.0
        %970 = vmatprep.subr.mxu0 0.0
        %971 = vmatpush1.msra.mxu0 0.0
        %972 = vmatprep.subr.mxu0 0.0
        %973 = vmatpush1.msra.mxu0 0.0
        %974 = vmatprep.subr.mxu0 0.0
        %975 = vmatpush1.msra.mxu0 0.0
        %976 = vmatprep.subr.mxu0 0.0
        %977 = vmatpush1.msra.mxu0 0.0
        %978 = vmatprep.subr.mxu0 0.0
        %979 = vmatpush1.msra.mxu0 0.0
        %980 = vmatprep.subr.mxu0 0.0
        %981 = vmatpush1.msra.mxu0 0.0
        %982 = vmatprep.subr.mxu0 0.0
        %983 = vmatpush1.msra.mxu0 0.0
        %984 = vmatprep.subr.mxu0 0.0
        %985 = vmatpush1.msra.mxu0 0.0
        %986 = vmatprep.subr.mxu0 0.0
        %987 = vmatpush1.msra.mxu0 0.0
        %988 = vmatprep.subr.mxu0 0.0
        %989 = vmatpush1.msra.mxu0 0.0
        %990 = vmatprep.subr.mxu0 0.0
        %991 = vmatpush1.msra.mxu0 0.0
        %992 = vmatprep.subr.mxu0 0.0
        %993 = vmatpush1.msra.mxu0 0.0
        %994 = vmatprep.subr.mxu0 0.0
        %995 = vmatpush1.msra.mxu0 0.0
        %996 = vmatprep.subr.mxu0 0.0
        %997 = vmatpush1.msra.mxu0 0.0
        %998 = vmatprep.subr.mxu0 0.0
        %999 = vmatpush1.msra.mxu0 0.0
        %1000 = vmatprep.subr.mxu0 0.0
        %1001 = vmatpush1.msra.mxu0 0.0
        %1002 = vmatprep.subr.mxu0 0.0
        %1003 = vmatpush1.msra.mxu0 0.0
        %1004 = vmatprep.subr.mxu0 0.0
        %1005 = vmatpush1.msra.mxu0 0.0
        %1006 = vmatprep.subr.mxu0 0.0
        %1007 = vmatpush1.msra.mxu0 0.0
        %1008 = vmatprep.subr.mxu0 0.0
        %1009 = vmatpush1.msra.mxu0 0.0
        %1010 = vmatprep.subr.mxu0 0.0
        %1011 = vmatpush1.msra.mxu0 0.0
        %1012 = vmatprep.subr.mxu0 0.0
        %1013 = vmatpush1.msra.mxu0 0.0
        %1014 = vmatprep.subr.mxu0 0.0
        %1015 = vmatpush1.msra.mxu0 0.0
        %1016 = vmatprep.subr.mxu0 0.0
        %1017 = vmatpush1.msra.mxu0 0.0
        %1018 = vmatprep.subr.mxu0 0.0
        %1019 = vmatpush1.msra.mxu0 0.0
        %1020 = vmatprep.subr.mxu0 0.0
        %1021 = vmatpush1.msra.mxu0 0.0
        %1022 = vmatprep.subr.mxu0 0.0
        %1023 = vmatpush1.msra.mxu0 0.0
        %1024 = vmatprep.mubr.f32.mxu0 0.0
        %1025 = vmatmul.mubr.f32.gmra.mrb[0].mxu0 %v954
        %v1026 = vpop.f32.mrb[0].mxu0
        %v1027 = vadd.f32 0.0, %v1026
        %v1028 = vpop.f32.mrb[0].mxu0
        %1029 = vdwg.mxu0
        %v1030 = vmul.f32 %v952, %v1027
        %v1032 = vsel %vm956, %v285, 0
        %1034 = vmatprep.subr.mxu0 0.0
        %1035 = vmatpush1.msra.mxu0 %v1032
        %1036 = vmatprep.subr.mxu0 0.0
        %1037 = vmatpush1.msra.mxu0 0.0
        %1038 = vmatprep.subr.mxu0 0.0
        %1039 = vmatpush1.msra.mxu0 0.0
        %1040 = vmatprep.subr.mxu0 0.0
        %1041 = vmatpush1.msra.mxu0 0.0
        %1042 = vmatprep.subr.mxu0 0.0
        %1043 = vmatpush1.msra.mxu0 0.0
        %1044 = vmatprep.subr.mxu0 0.0
        %1045 = vmatpush1.msra.mxu0 0.0
        %1046 = vmatprep.subr.mxu0 0.0
        %1047 = vmatpush1.msra.mxu0 0.0
        %1048 = vmatprep.subr.mxu0 0.0
        %1049 = vmatpush1.msra.mxu0 0.0
        %1050 = vmatprep.subr.mxu0 0.0
        %1051 = vmatpush1.msra.mxu0 0.0
        %1052 = vmatprep.subr.mxu0 0.0
        %1053 = vmatpush1.msra.mxu0 0.0
        %1054 = vmatprep.subr.mxu0 0.0
        %1055 = vmatpush1.msra.mxu0 0.0
        %1056 = vmatprep.subr.mxu0 0.0
        %1057 = vmatpush1.msra.mxu0 0.0
        %1058 = vmatprep.subr.mxu0 0.0
        %1059 = vmatpush1.msra.mxu0 0.0
        %1060 = vmatprep.subr.mxu0 0.0
        %1061 = vmatpush1.msra.mxu0 0.0
        %1062 = vmatprep.subr.mxu0 0.0
        %1063 = vmatpush1.msra.mxu0 0.0
        %1064 = vmatprep.subr.mxu0 0.0
        %1065 = vmatpush1.msra.mxu0 0.0
        %1066 = vmatprep.subr.mxu0 0.0
        %1067 = vmatpush1.msra.mxu0 0.0
        %1068 = vmatprep.subr.mxu0 0.0
        %1069 = vmatpush1.msra.mxu0 0.0
        %1070 = vmatprep.subr.mxu0 0.0
        %1071 = vmatpush1.msra.mxu0 0.0
        %1072 = vmatprep.subr.mxu0 0.0
        %1073 = vmatpush1.msra.mxu0 0.0
        %1074 = vmatprep.subr.mxu0 0.0
        %1075 = vmatpush1.msra.mxu0 0.0
        %1076 = vmatprep.subr.mxu0 0.0
        %1077 = vmatpush1.msra.mxu0 0.0
        %1078 = vmatprep.subr.mxu0 0.0
        %1079 = vmatpush1.msra.mxu0 0.0
        %1080 = vmatprep.subr.mxu0 0.0
        %1081 = vmatpush1.msra.mxu0 0.0
        %1082 = vmatprep.subr.mxu0 0.0
        %1083 = vmatpush1.msra.mxu0 0.0
        %1084 = vmatprep.subr.mxu0 0.0
        %1085 = vmatpush1.msra.mxu0 0.0
        %1086 = vmatprep.subr.mxu0 0.0
        %1087 = vmatpush1.msra.mxu0 0.0
        %1088 = vmatprep.subr.mxu0 0.0
        %1089 = vmatpush1.msra.mxu0 0.0
        %1090 = vmatprep.subr.mxu0 0.0
        %1091 = vmatpush1.msra.mxu0 0.0
        %1092 = vmatprep.subr.mxu0 0.0
        %1093 = vmatpush1.msra.mxu0 0.0
        %1094 = vmatprep.subr.mxu0 0.0
        %1095 = vmatpush1.msra.mxu0 0.0
        %1096 = vmatprep.subr.mxu0 0.0
        %1097 = vmatpush1.msra.mxu0 0.0
        %1098 = vmatprep.mubr.f32.mxu0 0.0
        %1099 = vmatmul.mubr.f32.gmra.mrb[0].mxu0 %v954
        %v1100 = vpop.f32.mrb[0].mxu0
        %v1101 = vadd.f32 0.0, %v1100
        %v1102 = vpop.f32.mrb[0].mxu0
        %1103 = vdwg.mxu0
        %1104 = vmatprep.subr.mxu0 0.0
        %1105 = vmatpush1.msra.mxu0 %v264
        %1106 = vmatprep.subr.mxu0 0.0
        %1107 = vmatpush1.msra.mxu0 %v265
        %1108 = vmatprep.subr.mxu0 0.0
        %1109 = vmatpush1.msra.mxu0 %v266
        %1110 = vmatprep.subr.mxu0 0.0
        %1111 = vmatpush1.msra.mxu0 %v267
        %1112 = vmatprep.subr.mxu0 0.0
        %1113 = vmatpush1.msra.mxu0 %v268
        %1114 = vmatprep.subr.mxu0 0.0
        %1115 = vmatpush1.msra.mxu0 %v269
        %1116 = vmatprep.subr.mxu0 0.0
        %1117 = vmatpush1.msra.mxu0 %v270
        %1118 = vmatprep.subr.mxu0 0.0
        %1119 = vmatpush1.msra.mxu0 %v271
        %1120 = vmatprep.subr.mxu0 0.0
        %1121 = vmatpush1.msra.mxu0 %v272
        %1122 = vmatprep.subr.mxu0 0.0
        %1123 = vmatpush1.msra.mxu0 %v273
        %1124 = vmatprep.subr.mxu0 0.0
        %1125 = vmatpush1.msra.mxu0 %v274
        %1126 = vmatprep.subr.mxu0 0.0
        %1127 = vmatpush1.msra.mxu0 %v275
        %1128 = vmatprep.subr.mxu0 0.0
        %1129 = vmatpush1.msra.mxu0 %v276
        %1130 = vmatprep.subr.mxu0 0.0
        %1131 = vmatpush1.msra.mxu0 %v277
        %1132 = vmatprep.subr.mxu0 0.0
        %1133 = vmatpush1.msra.mxu0 %v278
        %1134 = vmatprep.subr.mxu0 0.0
        %1135 = vmatpush1.msra.mxu0 %v279
        %1136 = vmatprep.subr.mxu0 0.0
        %1137 = vmatpush1.msra.mxu0 0.0
        %1138 = vmatprep.subr.mxu0 0.0
        %1139 = vmatpush1.msra.mxu0 0.0
        %1140 = vmatprep.subr.mxu0 0.0
        %1141 = vmatpush1.msra.mxu0 0.0
        %1142 = vmatprep.subr.mxu0 0.0
        %1143 = vmatpush1.msra.mxu0 0.0
        %1144 = vmatprep.subr.mxu0 0.0
        %1145 = vmatpush1.msra.mxu0 0.0
        %1146 = vmatprep.subr.mxu0 0.0
        %1147 = vmatpush1.msra.mxu0 0.0
        %1148 = vmatprep.subr.mxu0 0.0
        %1149 = vmatpush1.msra.mxu0 0.0
        %1150 = vmatprep.subr.mxu0 0.0
        %1151 = vmatpush1.msra.mxu0 0.0
        %1152 = vmatprep.subr.mxu0 0.0
        %1153 = vmatpush1.msra.mxu0 0.0
        %1154 = vmatprep.subr.mxu0 0.0
        %1155 = vmatpush1.msra.mxu0 0.0
        %1156 = vmatprep.subr.mxu0 0.0
        %1157 = vmatpush1.msra.mxu0 0.0
        %1158 = vmatprep.subr.mxu0 0.0
        %1159 = vmatpush1.msra.mxu0 0.0
        %1160 = vmatprep.subr.mxu0 0.0
        %1161 = vmatpush1.msra.mxu0 0.0
        %1162 = vmatprep.subr.mxu0 0.0
        %1163 = vmatpush1.msra.mxu0 0.0
        %1164 = vmatprep.subr.mxu0 0.0
        %1165 = vmatpush1.msra.mxu0 0.0
        %1166 = vmatprep.subr.mxu0 0.0
        %1167 = vmatpush1.msra.mxu0 0.0
        %1168 = vmatprep.mubr.f32.mxu0 0.0
        %1169 = vmatmul.mubr.f32.gmra.mrb[0].mxu0 %v1030
        %v1170 = vpop.f32.mrb[0].mxu0
        %v1171 = vadd.f32 %v1101, %v1170
        %v1172 = vpop.f32.mrb[0].mxu0
        %1173 = vdwg.mxu0
        %1174 = vst [vmem:[%s214] sm:$0xff] %v1171
        %s1175 = sand.u32 %s97, 1
        %s1176 = scalar_lea.sflag [#allocation4], %s1175
        %s1177 = sand.u32 %s97, 1
        %s1178 = smul.addr %s1177, 8
        %s1179 = scalar_lea.vmem [#allocation8], %s1178
        // Predicated region
        $region45: #{tpu_custom_call.1} parent=31 // pred_check
          %p1180 = pneg %p107
        $region46: #{tpu_custom_call.1} parent=31 // pred_check_branch
          %1182 = sbr.rel (%p1180) target = $region48
        $region47: #{tpu_custom_call.1} parent=31 // pred_region
          %s1184 = ssub.s32 128, 128
          %1185 = vsyncadd %s1176, %s1184
          %s1186 = smul.addr %s21, 128
          %s1187 = scalar_lea.hbm %s3, %s1186
          %s1189 = sshll.u32 %s1179, 4
          %s1190 = int_to_ptr.vmem [resolvable:$true] %s1189
          %1192 = dma.vmem_to_hbm [thread:$0]  %s1190, 128, %s1187, %s1176
        $region48: #{tpu_custom_call.1} parent=31 // pred_fallthru
          _
      $region32: #{tpu_custom_call.1} parent=5 // pred_fallthru
        _
      %p1193 = scmp.le.s32.totalorder 2, %s16
      // Predicated region
      $region49: #{tpu_custom_call.1} parent=5 // pred_check
        %p1194 = pneg %p1193
      $region50: #{tpu_custom_call.1} parent=5 // pred_check_branch
        %1196 = sbr.rel (%p1194) target = $region52
      $region51: #{tpu_custom_call.1} parent=5 // pred_region
        %s1197 = ssub.s32 %s16, 2
        // Predicated region
        $region53: #{tpu_custom_call.1} parent=51 // pred_check
          %p1198 = pneg %p113
        $region54: #{tpu_custom_call.1} parent=51 // pred_check_branch
          %1200 = sbr.rel (%p1198) target = $region56
        $region55: #{tpu_custom_call.1} parent=51 // pred_region
          %s1201 = sand.u32 %s98, 1
          %s1202 = scalar_lea.sflag [#allocation4], %s1201
          %s1203 = sand.u32 %s98, 1
          %s1204 = smul.addr %s1203, 8
          %s1205 = scalar_lea.vmem [#allocation8], %s1204
          %1206 = dma.done %s1202, 128
        $region56: #{tpu_custom_call.1} parent=51 // pred_fallthru
          _
      $region52: #{tpu_custom_call.1} parent=5 // pred_fallthru
        _
    $region6: #{tpu_custom_call.1} parent=1 // loop_footer
      %s20 = sadd.s32 1, %s16
    $region7: #{tpu_custom_call.1} parent=1 // loop_footer_branch
      %15 = sbr.rel target = $region3
    $region8: #{tpu_custom_call.1} parent=1 // loop_exit
      _
    %1207 = vsyncpa [#allocation3], 1
    %s1208 = scalar_lea.sflag [#allocation3], 1
    %1209 = vsyncpa %s1208, 1
    %1210 = vsyncpa [#allocation6], 1
    %1211 = vsyncpa [#allocation4], 1
    %s1212 = scalar_lea.sflag [#allocation4], 1
    %1213 = vsyncpa %s1212, 1

</llo_original>
